<compile_context>
chip_gen: v7x
topology: tpu7x:2x2x1
jax: 0.10.0
libtpu: 0.0.40
codegen_flags: <defaults>
</compile_context>

<pallas_src>
import numpy as np
import jax
import jax.numpy as jnp
from jax.experimental import pallas as pl
from jax.experimental.pallas import tpu as pltpu

# ---------------------------------------------------------------------------
# synthetic stand-in for cfg.* (deterministic, in-script)
# ---------------------------------------------------------------------------
PRE_NMS_TOP_N = 128      # cfg.TEST.RPN_PRE_NMS_TOP_N (shrunk for small demo)
POST_NMS_TOP_N = 16      # cfg.TEST.RPN_POST_NMS_TOP_N
NMS_THRESH = 0.7         # cfg.TEST.RPN_NMS_THRESH
FEAT_STRIDE = 16         # cfg.FEAT_STRIDE[0]
# NOTE: cfg.TEST.RPN_MIN_SIZE is read but never used in the reference forward.

_LANES = 128                        # lane width; pre_n is padded to a multiple of this
_MASK_VMEM_BUDGET = 16 * 1024 * 1024  # budget for the double-buffered (M, TN) mask block


def _round_up(x, m):
    return ((x + m - 1) // m) * m


# ---------------------------------------------------------------------------
# generate_anchors (standard Faster R-CNN numpy code, deterministic)
# ---------------------------------------------------------------------------
def _whctrs(anchor):
    w = anchor[2] - anchor[0] + 1
    h = anchor[3] - anchor[1] + 1
    x_ctr = anchor[0] + 0.5 * (w - 1)
    y_ctr = anchor[1] + 0.5 * (h - 1)
    return w, h, x_ctr, y_ctr


def _mkanchors(ws, hs, x_ctr, y_ctr):
    ws = ws[:, np.newaxis]
    hs = hs[:, np.newaxis]
    return np.hstack((x_ctr - 0.5 * (ws - 1), y_ctr - 0.5 * (hs - 1),
                      x_ctr + 0.5 * (ws - 1), y_ctr + 0.5 * (hs - 1)))


def _ratio_enum(anchor, ratios):
    w, h, x_ctr, y_ctr = _whctrs(anchor)
    size = w * h
    size_ratios = size / ratios
    ws = np.round(np.sqrt(size_ratios))
    hs = np.round(ws * ratios)
    return _mkanchors(ws, hs, x_ctr, y_ctr)


def _scale_enum(anchor, scales):
    w, h, x_ctr, y_ctr = _whctrs(anchor)
    ws = w * scales
    hs = h * scales
    return _mkanchors(ws, hs, x_ctr, y_ctr)


def generate_anchors(base_size=16, ratios=np.array([0.5, 1, 2]),
                     scales=np.array([8, 16, 32])):
    base_anchor = np.array([1, 1, base_size, base_size], dtype=np.float64) - 1
    ratio_anchors = _ratio_enum(base_anchor, ratios)
    return np.vstack([_scale_enum(ratio_anchors[i, :], scales)
                      for i in range(ratio_anchors.shape[0])])


# ---------------------------------------------------------------------------
# Tile-width selection (opts 1 & 2):
#   * B >= 2: one column tile per image (the batch axis already gives the grid
#     enough parallelism; extra M tiles are pure per-step overhead).
#   * B < 2 : split the proposal axis so both v7x TensorCores get work
#     (harmless on the single-TC v5e / v6e).
#   * in all cases keep the (M, TN) f32 mask block under a VMEM budget.
# ---------------------------------------------------------------------------
def _pick_tile(M, B):
    cands = [d for d in range(_LANES, M + 1, _LANES)
             if M % d == 0 and 2 * 4 * M * d <= _MASK_VMEM_BUDGET]
    if not cands:
        cands = [_LANES]
    tn = max(cands)
    if B < 2 and tn == M and M > _LANES:
        smaller = [d for d in cands if d < M]
        if smaller:
            tn = max(smaller)
    return tn


# ---------------------------------------------------------------------------
# Fused Pallas kernel: bbox decode + clip_to_image + IoU suppression mask.
#   packed_ref   : VMEM (1, 8, M)   rows [ctr_x, ctr_y, w, h, dx, dy, dw, dh]
#   packed_t_ref : VMEM (1, M, 8)   same data, proposals along sublanes
#   bound_ref    : VMEM (1, 4, 1)   [im_w-1, im_h-1, im_w-1, im_h-1]
#   boxes_ref    : VMEM (1, 4, TN)  rows [x1, y1, x2, y2] (clipped), lane-dense
#   mask_ref     : VMEM (1, M, TN)  mask[i, j] = 1.0 if keeping box i suppresses
#                                   box j (IoU > thresh and j after i in score order)
# ---------------------------------------------------------------------------
def _decode_clip_iou_kernel(packed_ref, packed_t_ref, bound_ref, boxes_ref, mask_ref):
    M = packed_ref.shape[2]
    TN = boxes_ref.shape[2]
    bnd = bound_ref[0, :, :]                       # (4, 1) static-index read, no SMEM scalars

    # ---- lane-dense decode + clip of this proposal tile -> single 4-row store
    if TN == M:                                    # static: common case, one tile per image
        p8 = packed_ref[0, :, :]                   # (8, M)
        col0 = 0
    else:                                          # B < 2 split (v7x) / VMEM-capped tile
        col0 = pl.multiple_of(pl.program_id(1) * TN, _LANES)
        p8 = packed_ref[0, :, pl.ds(col0, TN)]     # (8, TN)
    ctr, sz = p8[0:2, :], p8[2:4, :]
    dxy, dwh = p8[4:6, :], p8[6:8, :]
    pred_ctr = dxy * sz + ctr
    half = 0.5 * (jnp.exp(dwh) * sz)
    boxes_tile = jnp.clip(
        jnp.concatenate([pred_ctr - half, pred_ctr + half], axis=0),   # (4, TN)
        0.0, bnd)                                  # (4,1) bound broadcasts along lanes
    boxes_ref[0, :, :] = boxes_tile                # one full 4-row lane-dense store

    # ---- row side: all M proposals, coordinates along sublanes ((M, 1) columns),
    # decoded from the pre-transposed pack (no in-kernel lane<->sublane transpose).
    pt = packed_t_ref[0, :, :]                     # (M, 8)
    pcx = pt[:, 4:5] * pt[:, 2:3] + pt[:, 0:1]
    pcy = pt[:, 5:6] * pt[:, 3:4] + pt[:, 1:2]
    half_w = 0.5 * (jnp.exp(pt[:, 6:7]) * pt[:, 2:3])
    half_h = 0.5 * (jnp.exp(pt[:, 7:8]) * pt[:, 3:4])
    max_x, max_y = bnd[0:1, :], bnd[1:2, :]        # (1, 1)
    x1c = jnp.clip(pcx - half_w, 0.0, max_x)       # (M, 1)
    y1c = jnp.clip(pcy - half_h, 0.0, max_y)
    x2c = jnp.clip(pcx + half_w, 0.0, max_x)
    y2c = jnp.clip(pcy + half_h, 0.0, max_y)
    area_c = (x2c - x1c + 1.0) * (y2c - y1c + 1.0)

    x1r, y1r = boxes_tile[0:1, :], boxes_tile[1:2, :]   # (1, TN)
    x2r, y2r = boxes_tile[2:3, :], boxes_tile[3:4, :]
    area_r = (x2r - x1r + 1.0) * (y2r - y1r + 1.0)

    # (M, TN) IoU tile — full-vreg VPU work, no divides (compare inter > t * union).
    iw = jnp.maximum(jnp.minimum(x2c, x2r) - jnp.maximum(x1c, x1r) + 1.0, 0.0)
    ih = jnp.maximum(jnp.minimum(y2c, y2r) - jnp.maximum(y1c, y1r) + 1.0, 0.0)
    inter = iw * ih
    union = area_c + area_r - inter                # >= 1 with the +1 convention
    over = inter > NMS_THRESH * union              # strict '>' matches reference nms

    i_idx = jax.lax.broadcasted_iota(jnp.int32, (M, TN), 0)
    j_idx = jax.lax.broadcasted_iota(jnp.int32, (M, TN), 1) + col0
    mask_ref[0, :, :] = jnp.where(jnp.logical_and(over, j_idx > i_idx), 1.0, 0.0)


def decode_clip_iou_pallas(packed, packed_t, bound4, TN):
    """packed: (B,8,M), packed_t: (B,M,8), bound4: (B,4,1).
    Returns (boxes (B,4,M), suppression mask (B,M,M))."""
    B, _, M = packed.shape
    n_t = M // TN
    return pl.pallas_call(
        _decode_clip_iou_kernel,
        out_shape=(jax.ShapeDtypeStruct((B, 4, M), jnp.float32),
                   jax.ShapeDtypeStruct((B, M, M), jnp.float32)),
        grid_spec=pl.GridSpec(
            grid=(B, n_t),
            in_specs=[
                pl.BlockSpec((1, 8, M), lambda b, t: (b, 0, 0)),   # stays resident over t
                pl.BlockSpec((1, M, 8), lambda b, t: (b, 0, 0)),
                pl.BlockSpec((1, 4, 1), lambda b, t: (b, 0, 0)),   # per-image clip bounds
            ],
            out_specs=(
                pl.BlockSpec((1, 4, TN), lambda b, t: (b, 0, t)),
                pl.BlockSpec((1, M, TN), lambda b, t: (b, 0, t)),
            ),
        ),
        compiler_params=pltpu.CompilerParams(
            dimension_semantics=("parallel", "parallel")),
        cost_estimate=pl.CostEstimate(
            flops=B * (14 * M * M + 44 * M),
            transcendentals=4 * B * M,
            bytes_accessed=4 * B * (16 * M + 4 + 4 * M + M * M)),
    )(packed, packed_t, bound4)


# ---------------------------------------------------------------------------
# Greedy NMS scan over the kernel-produced suppression mask (plain JAX).
# TODO(synk): greedy NMS is inherently sequential; the scan stays as a
#             lax.fori_loop in XLA, but each step is now one cheap M-wide
#             select over the precomputed mask (no argmax / IoU recompute).
# ---------------------------------------------------------------------------
def _greedy_scan(suppress, pre_n, post_n):
    M = suppress.shape[0]
    keep0 = jnp.arange(M) < pre_n                 # padded lanes can never be kept

    def body(i, keep):
        row = jnp.where(keep[i], suppress[i], 0.0)
        return jnp.logical_and(keep, row == 0.0)

    keep = jax.lax.fori_loop(0, pre_n, body, keep0, unroll=8)

    # indices of the first post_n kept boxes, in descending-score order
    rank = jnp.cumsum(keep.astype(jnp.int32)) - 1
    slot = jnp.where(keep, jnp.minimum(rank, post_n), post_n)     # post_n = overflow bucket
    sel = jnp.full((post_n + 1,), -1, dtype=jnp.int32)
    sel = sel.at[slot].set(jnp.arange(M, dtype=jnp.int32))
    sel = sel[:post_n]
    return sel, sel >= 0


# ---------------------------------------------------------------------------
# ProposalLayer (JAX wrapper matching the PyTorch module's forward semantics)
# ---------------------------------------------------------------------------
class ProposalLayerJAX:
    def __init__(self, scales, aspect_ratios):
        anchors = generate_anchors(scales=np.array(scales),
                                   ratios=np.array(aspect_ratios))   # (A, 4)
        # base-anchor (ctr_x, ctr_y, w, h), precomputed once (hoisted out of the kernel)
        aw = anchors[:, 2] - anchors[:, 0] + 1.0
        ah = anchors[:, 3] - anchors[:, 1] + 1.0
        acx = anchors[:, 0] + 0.5 * aw
        acy = anchors[:, 1] + 0.5 * ah
        self._base_cwh = jnp.asarray(np.stack([acx, acy, aw, ah], axis=1),
                                     dtype=jnp.float32)               # (A, 4)
        self._num_anchors = anchors.shape[0]
        self._forward = jax.jit(self._forward_impl, static_argnums=(2, 3))

    def __call__(self, inputs, im_shape, feat_height, feat_width):
        return self._forward(inputs, im_shape, feat_height, feat_width)

    def _forward_impl(self, inputs, im_shape, feat_height, feat_width):
        rpn_cls_prob, rpn_bbox_pred = inputs           # NCHW
        A = self._num_anchors
        B = rpn_cls_prob.shape[0]
        H, W = feat_height, feat_width
        HW = H * W
        N = HW * A

        # fg scores flattened in (a, h, w) order — pure reshape, no transpose.
        scores_flat = rpn_cls_prob[:, A:, :, :].reshape(B, N)

        # --- select top-k FIRST; decode only the survivors ------------------
        pre_n = min(PRE_NMS_TOP_N, N)
        topk_sc, topk_idx = jax.lax.top_k(scores_flat, pre_n)   # (B, pre_n)
        del topk_sc  # scores only needed for ordering, which top_k already provides

        a_idx = topk_idx // HW
        hw = topk_idx % HW
        h_idx = hw // W
        w_idx = hw % W

        # gathered anchors in (ctr_x, ctr_y, w, h) form
        base = self._base_cwh[a_idx]                             # (B, pre_n, 4)
        ctr_x = base[..., 0] + w_idx.astype(jnp.float32) * FEAT_STRIDE
        ctr_y = base[..., 1] + h_idx.astype(jnp.float32) * FEAT_STRIDE
        aw, ah = base[..., 2], base[..., 3]

        # gather deltas straight out of the flat NCHW buffer:
        #   coordinate c of proposal (a, h, w) lives at channel 4*a + c.
        deltas_flat = rpn_bbox_pred.reshape(B, 4 * A * HW)
        base_flat = (4 * a_idx) * HW + hw                        # dx slot
        coords = jnp.arange(4, dtype=topk_idx.dtype) * HW        # (4,)
        gather_idx = base_flat[:, None, :] + coords[None, :, None]   # (B, 4, pre_n)
        deltas_g = jnp.take_along_axis(
            deltas_flat, gather_idx.reshape(B, 4 * pre_n), axis=1
        ).reshape(B, 4, pre_n).astype(jnp.float32)
        dx, dy, dw, dh = (deltas_g[:, 0], deltas_g[:, 1],
                          deltas_g[:, 2], deltas_g[:, 3])        # (B, pre_n) each

        # pack both layouts from the same gathered vectors:
        #   packed   (B, 8, M): proposals along lanes   (lane-dense kernel input/output)
        #   packed_t (B, M, 8): proposals along sublanes (row side of the IoU tile)
        cols = [ctr_x, ctr_y, aw, ah, dx, dy, dw, dh]
        packed = jnp.stack(cols, axis=1)                         # (B, 8, pre_n)
        packed_t = jnp.stack(cols, axis=2)                       # (B, pre_n, 8)

        M = _round_up(pre_n, _LANES)                             # 128-lane pad only (opt 1)
        TN = _pick_tile(M, B)
        if M > pre_n:
            packed = jnp.pad(packed, ((0, 0), (0, 0), (0, M - pre_n)))
            packed_t = jnp.pad(packed_t, ((0, 0), (0, M - pre_n), (0, 0)))

        # per-image clip bounds for rows [x1, y1, x2, y2]: [im_w-1, im_h-1, im_w-1, im_h-1]
        maxs = im_shape.astype(jnp.float32) - 1.0                # (B, 2) [max_y, max_x]
        bound4 = jnp.stack([maxs[:, 1], maxs[:, 0], maxs[:, 1], maxs[:, 0]],
                           axis=1)[:, :, None]                   # (B, 4, 1)

        # --- Pallas hot path: decode + clip + IoU suppression mask -----------
        boxes_cm, sup_mask = decode_clip_iou_pallas(packed, packed_t, bound4, TN)
        # boxes_cm: (B, 4, M) coordinate-row layout (kept all the way — no big transpose)
        # sup_mask: (B, M, M)

        # --- greedy NMS scan over the mask (padded lanes excluded via keep0) --
        sel, valid = jax.vmap(
            lambda m: _greedy_scan(m, pre_n, POST_NMS_TOP_N))(sup_mask)   # (B, P)

        idx3 = jnp.broadcast_to(jnp.maximum(sel, 0)[:, None, :],
                                (B, 4, POST_NMS_TOP_N))
        kept_cm = jnp.take_along_axis(boxes_cm, idx3, axis=2)    # (B, 4, P)
        kept = jnp.transpose(kept_cm, (0, 2, 1))                 # tiny (B, P, 4) transpose
        boxes_out = jnp.where(valid[..., None], kept, 0.0)

        batch_ids = jnp.broadcast_to(
            jnp.arange(B, dtype=jnp.float32)[:, None, None],
            (B, POST_NMS_TOP_N, 1))
        return jnp.concatenate([batch_ids, boxes_out], axis=2)   # (B, P, 5)


# ---------------------------------------------------------------------------
if __name__ == "__main__":
    key = jax.random.PRNGKey(0)
    B, H, W = 2, 16, 16
    scales = (8, 16, 32)
    ratios = (0.5, 1.0, 2.0)
    A = len(scales) * len(ratios)                      # 9

    k1, k2 = jax.random.split(key)
    rpn_cls_prob = jax.nn.sigmoid(
        jax.random.normal(k1, (B, 2 * A, H, W), dtype=jnp.float32))
    rpn_bbox_pred = 0.1 * jax.random.normal(
        k2, (B, 4 * A, H, W), dtype=jnp.float32)
    im_shape = jnp.array([[H * FEAT_STRIDE, W * FEAT_STRIDE],
                          [200.0, 240.0]], dtype=jnp.float32)

    layer = ProposalLayerJAX(scales, ratios)
    out = layer((rpn_cls_prob, rpn_bbox_pred), im_shape, H, W)
    out = jax.block_until_ready(out)
    assert out.shape == (B, POST_NMS_TOP_N, 5)
    print("KERNEL_OK")
</pallas_src>

<mosaic_0001>
module attributes {stable_mosaic.version = 11 : i64} {
  func.func @_decode_clip_iou_kernel(%arg0: i32, %arg1: i32, %arg2: memref<1x8x128xf32, #tpu.memory_space<vmem>>, %arg3: memref<1x128x8xf32, #tpu.memory_space<vmem>>, %arg4: memref<1x4x1xf32, #tpu.memory_space<vmem>>, %arg5: memref<1x4x128xf32, #tpu.memory_space<vmem>>, %arg6: memref<1x128x128xf32, #tpu.memory_space<vmem>>) attributes {dimension_semantics = [#tpu.dimension_semantics<parallel>, #tpu.dimension_semantics<parallel>], iteration_bounds = array<i64: 2, 1>, scalar_prefetch = 0 : i64, scratch_operands = 0 : i64, tpu.core_type = #tpu.core_type<tc>, window_params = [{transform_indices = @transform_0, window_bounds = array<i64: 1, 8, 128>}, {transform_indices = @transform_1, window_bounds = array<i64: 1, 128, 8>}, {transform_indices = @transform_2, window_bounds = array<i64: 1, 4, 1>}, {transform_indices = @transform_3, window_bounds = array<i64: 1, 4, 128>}, {transform_indices = @transform_4, window_bounds = array<i64: 1, 128, 128>}]} {
    %c0 = arith.constant 0 : index
    %c0_0 = arith.constant 0 : index
    %c0_1 = arith.constant 0 : index
    %0 = vector.load %arg4[%c0, %c0_0, %c0_1] : memref<1x4x1xf32, #tpu.memory_space<vmem>>, vector<1x4x1xf32>
    %1 = vector.shape_cast %0 : vector<1x4x1xf32> to vector<4x1xf32>
    %c0_2 = arith.constant 0 : index
    %c0_3 = arith.constant 0 : index
    %c0_4 = arith.constant 0 : index
    %2 = vector.load %arg2[%c0_2, %c0_3, %c0_4] : memref<1x8x128xf32, #tpu.memory_space<vmem>>, vector<1x8x128xf32>
    %3 = vector.shape_cast %2 : vector<1x8x128xf32> to vector<8x128xf32>
    %4 = vector.extract_strided_slice %3 {offsets = [0, 0], sizes = [2, 128], strides = [1, 1]} : vector<8x128xf32> to vector<2x128xf32>
    %5 = vector.extract_strided_slice %3 {offsets = [2, 0], sizes = [2, 128], strides = [1, 1]} : vector<8x128xf32> to vector<2x128xf32>
    %6 = vector.extract_strided_slice %3 {offsets = [4, 0], sizes = [2, 128], strides = [1, 1]} : vector<8x128xf32> to vector<2x128xf32>
    %7 = vector.extract_strided_slice %3 {offsets = [6, 0], sizes = [2, 128], strides = [1, 1]} : vector<8x128xf32> to vector<2x128xf32>
    %8 = arith.mulf %6, %5 : vector<2x128xf32>
    %9 = arith.addf %8, %4 : vector<2x128xf32>
    %10 = math.exp %7 : vector<2x128xf32>
    %11 = arith.mulf %10, %5 : vector<2x128xf32>
    %cst = arith.constant 5.000000e-01 : f32
    %12 = vector.broadcast %cst : f32 to vector<2x128xf32>
    %13 = arith.mulf %12, %11 : vector<2x128xf32>
    %14 = arith.subf %9, %13 : vector<2x128xf32>
    %15 = arith.addf %9, %13 : vector<2x128xf32>
    %16 = tpu.concatenate %14, %15 in 0 : vector<2x128xf32>, vector<2x128xf32> -> vector<4x128xf32>
    %cst_5 = arith.constant 0.000000e+00 : f32
    %17 = vector.broadcast %cst_5 : f32 to vector<4x128xf32>
    %18 = arith.maximumf %17, %16 : vector<4x128xf32>
    %19 = vector.broadcast %1 : vector<4x1xf32> to vector<4x128xf32>
    %20 = arith.minimumf %19, %18 : vector<4x128xf32>
    %c0_6 = arith.constant 0 : index
    %c0_7 = arith.constant 0 : index
    %c0_8 = arith.constant 0 : index
    %21 = vector.load %arg5[%c0_6, %c0_7, %c0_8] : memref<1x4x128xf32, #tpu.memory_space<vmem>>, vector<1x4x128xf32>
    %22 = vector.shape_cast %21 : vector<1x4x128xf32> to vector<4x128xf32>
    %23 = vector.shape_cast %20 : vector<4x128xf32> to vector<1x4x128xf32>
    tpu.vector_store %arg5[%c0_6, %c0_7, %c0_8], %23 {strides = array<i32>} : memref<1x4x128xf32, #tpu.memory_space<vmem>>, vector<1x4x128xf32>,
    %c0_9 = arith.constant 0 : index
    %c0_10 = arith.constant 0 : index
    %c0_11 = arith.constant 0 : index
    %24 = vector.load %arg3[%c0_9, %c0_10, %c0_11] : memref<1x128x8xf32, #tpu.memory_space<vmem>>, vector<1x128x8xf32>
    %25 = vector.shape_cast %24 : vector<1x128x8xf32> to vector<128x8xf32>
    %26 = vector.extract_strided_slice %25 {offsets = [0, 4], sizes = [128, 1], strides = [1, 1]} : vector<128x8xf32> to vector<128x1xf32>
    %27 = vector.extract_strided_slice %25 {offsets = [0, 2], sizes = [128, 1], strides = [1, 1]} : vector<128x8xf32> to vector<128x1xf32>
    %28 = arith.mulf %26, %27 : vector<128x1xf32>
    %29 = vector.extract_strided_slice %25 {offsets = [0, 0], sizes = [128, 1], strides = [1, 1]} : vector<128x8xf32> to vector<128x1xf32>
    %30 = arith.addf %28, %29 : vector<128x1xf32>
    %31 = vector.extract_strided_slice %25 {offsets = [0, 5], sizes = [128, 1], strides = [1, 1]} : vector<128x8xf32> to vector<128x1xf32>
    %32 = vector.extract_strided_slice %25 {offsets = [0, 3], sizes = [128, 1], strides = [1, 1]} : vector<128x8xf32> to vector<128x1xf32>
    %33 = arith.mulf %31, %32 : vector<128x1xf32>
    %34 = vector.extract_strided_slice %25 {offsets = [0, 1], sizes = [128, 1], strides = [1, 1]} : vector<128x8xf32> to vector<128x1xf32>
    %35 = arith.addf %33, %34 : vector<128x1xf32>
    %36 = vector.extract_strided_slice %25 {offsets = [0, 6], sizes = [128, 1], strides = [1, 1]} : vector<128x8xf32> to vector<128x1xf32>
    %37 = math.exp %36 : vector<128x1xf32>
    %38 = vector.extract_strided_slice %25 {offsets = [0, 2], sizes = [128, 1], strides = [1, 1]} : vector<128x8xf32> to vector<128x1xf32>
    %39 = arith.mulf %37, %38 : vector<128x1xf32>
    %cst_12 = arith.constant 5.000000e-01 : f32
    %40 = vector.broadcast %cst_12 : f32 to vector<128x1xf32>
    %41 = arith.mulf %40, %39 : vector<128x1xf32>
    %42 = vector.extract_strided_slice %25 {offsets = [0, 7], sizes = [128, 1], strides = [1, 1]} : vector<128x8xf32> to vector<128x1xf32>
    %43 = math.exp %42 : vector<128x1xf32>
    %44 = vector.extract_strided_slice %25 {offsets = [0, 3], sizes = [128, 1], strides = [1, 1]} : vector<128x8xf32> to vector<128x1xf32>
    %45 = arith.mulf %43, %44 : vector<128x1xf32>
    %cst_13 = arith.constant 5.000000e-01 : f32
    %46 = vector.broadcast %cst_13 : f32 to vector<128x1xf32>
    %47 = arith.mulf %46, %45 : vector<128x1xf32>
    %48 = vector.extract_strided_slice %1 {offsets = [0, 0], sizes = [1, 1], strides = [1, 1]} : vector<4x1xf32> to vector<1x1xf32>
    %49 = vector.extract_strided_slice %1 {offsets = [1, 0], sizes = [1, 1], strides = [1, 1]} : vector<4x1xf32> to vector<1x1xf32>
    %50 = arith.subf %30, %41 : vector<128x1xf32>
    %cst_14 = arith.constant 0.000000e+00 : f32
    %51 = vector.broadcast %cst_14 : f32 to vector<128x1xf32>
    %52 = arith.maximumf %51, %50 : vector<128x1xf32>
    %53 = vector.broadcast %48 : vector<1x1xf32> to vector<128x1xf32>
    %54 = arith.minimumf %53, %52 : vector<128x1xf32>
    %55 = arith.subf %35, %47 : vector<128x1xf32>
    %cst_15 = arith.constant 0.000000e+00 : f32
    %56 = vector.broadcast %cst_15 : f32 to vector<128x1xf32>
    %57 = arith.maximumf %56, %55 : vector<128x1xf32>
    %58 = vector.broadcast %49 : vector<1x1xf32> to vector<128x1xf32>
    %59 = arith.minimumf %58, %57 : vector<128x1xf32>
    %60 = arith.addf %30, %41 : vector<128x1xf32>
    %cst_16 = arith.constant 0.000000e+00 : f32
    %61 = vector.broadcast %cst_16 : f32 to vector<128x1xf32>
    %62 = arith.maximumf %61, %60 : vector<128x1xf32>
    %63 = vector.broadcast %48 : vector<1x1xf32> to vector<128x1xf32>
    %64 = arith.minimumf %63, %62 : vector<128x1xf32>
    %65 = arith.addf %35, %47 : vector<128x1xf32>
    %cst_17 = arith.constant 0.000000e+00 : f32
    %66 = vector.broadcast %cst_17 : f32 to vector<128x1xf32>
    %67 = arith.maximumf %66, %65 : vector<128x1xf32>
    %68 = vector.broadcast %49 : vector<1x1xf32> to vector<128x1xf32>
    %69 = arith.minimumf %68, %67 : vector<128x1xf32>
    %70 = arith.subf %64, %54 : vector<128x1xf32>
    %cst_18 = arith.constant 1.000000e+00 : f32
    %71 = vector.broadcast %cst_18 : f32 to vector<128x1xf32>
    %72 = arith.addf %70, %71 : vector<128x1xf32>
    %73 = arith.subf %69, %59 : vector<128x1xf32>
    %cst_19 = arith.constant 1.000000e+00 : f32
    %74 = vector.broadcast %cst_19 : f32 to vector<128x1xf32>
    %75 = arith.addf %73, %74 : vector<128x1xf32>
    %76 = arith.mulf %72, %75 : vector<128x1xf32>
    %77 = vector.extract_strided_slice %20 {offsets = [0, 0], sizes = [1, 128], strides = [1, 1]} : vector<4x128xf32> to vector<1x128xf32>
    %78 = vector.extract_strided_slice %20 {offsets = [1, 0], sizes = [1, 128], strides = [1, 1]} : vector<4x128xf32> to vector<1x128xf32>
    %79 = vector.extract_strided_slice %20 {offsets = [2, 0], sizes = [1, 128], strides = [1, 1]} : vector<4x128xf32> to vector<1x128xf32>
    %80 = vector.extract_strided_slice %20 {offsets = [3, 0], sizes = [1, 128], strides = [1, 1]} : vector<4x128xf32> to vector<1x128xf32>
    %81 = arith.subf %79, %77 : vector<1x128xf32>
    %cst_20 = arith.constant 1.000000e+00 : f32
    %82 = vector.broadcast %cst_20 : f32 to vector<1x128xf32>
    %83 = arith.addf %81, %82 : vector<1x128xf32>
    %84 = arith.subf %80, %78 : vector<1x128xf32>
    %cst_21 = arith.constant 1.000000e+00 : f32
    %85 = vector.broadcast %cst_21 : f32 to vector<1x128xf32>
    %86 = arith.addf %84, %85 : vector<1x128xf32>
    %87 = arith.mulf %83, %86 : vector<1x128xf32>
    %88 = vector.broadcast %64 : vector<128x1xf32> to vector<128x128xf32>
    %89 = vector.broadcast %79 : vector<1x128xf32> to vector<128x128xf32>
    %90 = arith.minimumf %88, %89 : vector<128x128xf32>
    %91 = vector.broadcast %54 : vector<128x1xf32> to vector<128x128xf32>
    %92 = vector.broadcast %77 : vector<1x128xf32> to vector<128x128xf32>
    %93 = arith.maximumf %91, %92 : vector<128x128xf32>
    %94 = arith.subf %90, %93 : vector<128x128xf32>
    %cst_22 = arith.constant 1.000000e+00 : f32
    %95 = vector.broadcast %cst_22 : f32 to vector<128x128xf32>
    %96 = arith.addf %94, %95 : vector<128x128xf32>
    %cst_23 = arith.constant 0.000000e+00 : f32
    %97 = vector.broadcast %cst_23 : f32 to vector<128x128xf32>
    %98 = arith.maximumf %96, %97 : vector<128x128xf32>
    %99 = vector.broadcast %69 : vector<128x1xf32> to vector<128x128xf32>
    %100 = vector.broadcast %80 : vector<1x128xf32> to vector<128x128xf32>
    %101 = arith.minimumf %99, %100 : vector<128x128xf32>
    %102 = vector.broadcast %59 : vector<128x1xf32> to vector<128x128xf32>
    %103 = vector.broadcast %78 : vector<1x128xf32> to vector<128x128xf32>
    %104 = arith.maximumf %102, %103 : vector<128x128xf32>
    %105 = arith.subf %101, %104 : vector<128x128xf32>
    %cst_24 = arith.constant 1.000000e+00 : f32
    %106 = vector.broadcast %cst_24 : f32 to vector<128x128xf32>
    %107 = arith.addf %105, %106 : vector<128x128xf32>
    %cst_25 = arith.constant 0.000000e+00 : f32
    %108 = vector.broadcast %cst_25 : f32 to vector<128x128xf32>
    %109 = arith.maximumf %107, %108 : vector<128x128xf32>
    %110 = arith.mulf %98, %109 : vector<128x128xf32>
    %111 = vector.broadcast %76 : vector<128x1xf32> to vector<128x128xf32>
    %112 = vector.broadcast %87 : vector<1x128xf32> to vector<128x128xf32>
    %113 = arith.addf %111, %112 : vector<128x128xf32>
    %114 = arith.subf %113, %110 : vector<128x128xf32>
    %cst_26 = arith.constant 0.699999988 : f32
    %115 = vector.broadcast %cst_26 : f32 to vector<128x128xf32>
    %116 = arith.mulf %115, %114 : vector<128x128xf32>
    %117 = arith.cmpf ogt, %110, %116 : vector<128x128xf32>
    %118 = tpu.iota {dimensions = array<i32: 0>} : vector<128x128xi32>
    %119 = tpu.iota {dimensions = array<i32: 1>} : vector<128x128xi32>
    %c0_i32 = arith.constant 0 : i32
    %120 = vector.broadcast %c0_i32 : i32 to vector<128x128xi32>
    %121 = arith.addi %119, %120 : vector<128x128xi32>
    %122 = arith.cmpi sgt, %121, %118 : vector<128x128xi32>
    %123 = arith.andi %117, %122 : vector<128x128xi1>
    %cst_27 = arith.constant 1.000000e+00 : f32
    %cst_28 = arith.constant 0.000000e+00 : f32
    %124 = vector.broadcast %cst_27 : f32 to vector<128x128xf32>
    %125 = vector.broadcast %cst_28 : f32 to vector<128x128xf32>
    %126 = arith.select %123, %124, %125 : vector<128x128xi1>, vector<128x128xf32>
    %c0_29 = arith.constant 0 : index
    %c0_30 = arith.constant 0 : index
    %c0_31 = arith.constant 0 : index
    %127 = vector.load %arg6[%c0_29, %c0_30, %c0_31] : memref<1x128x128xf32, #tpu.memory_space<vmem>>, vector<1x128x128xf32>
    %128 = vector.shape_cast %127 : vector<1x128x128xf32> to vector<128x128xf32>
    %129 = vector.shape_cast %126 : vector<128x128xf32> to vector<1x128x128xf32>
    tpu.vector_store %arg6[%c0_29, %c0_30, %c0_31], %129 {strides = array<i32>} : memref<1x128x128xf32, #tpu.memory_space<vmem>>, vector<1x128x128xf32>,
    return
  }
  func.func @transform_0(%arg0: i32, %arg1: i32) -> (i32, i32, i32) {
    %c0_i32 = arith.constant 0 : i32
    %c0_i32_0 = arith.constant 0 : i32
    %c0_i32_1 = arith.constant 0 : i32
    return %arg0, %c0_i32, %c0_i32_0 : i32, i32, i32
  }
  func.func @transform_1(%arg0: i32, %arg1: i32) -> (i32, i32, i32) {
    %c0_i32 = arith.constant 0 : i32
    %c0_i32_0 = arith.constant 0 : i32
    %c0_i32_1 = arith.constant 0 : i32
    return %arg0, %c0_i32, %c0_i32_0 : i32, i32, i32
  }
  func.func @transform_2(%arg0: i32, %arg1: i32) -> (i32, i32, i32) {
    %c0_i32 = arith.constant 0 : i32
    %c0_i32_0 = arith.constant 0 : i32
    %c0_i32_1 = arith.constant 0 : i32
    return %arg0, %c0_i32, %c0_i32_0 : i32, i32, i32
  }
  func.func @transform_3(%arg0: i32, %arg1: i32) -> (i32, i32, i32) {
    %c0_i32 = arith.constant 0 : i32
    %c0_i32_0 = arith.constant 0 : i32
    return %arg0, %c0_i32, %arg1 : i32, i32, i32
  }
  func.func @transform_4(%arg0: i32, %arg1: i32) -> (i32, i32, i32) {
    %c0_i32 = arith.constant 0 : i32
    %c0_i32_0 = arith.constant 0 : i32
    return %arg0, %c0_i32, %arg1 : i32, i32, i32
  }
}

</mosaic_0001>

<llo_original>
// kernel: _forward_impl.1
$region0: #{_forward_impl.1}
  #allocation0 [shape = 'u32[]', space=smem, size = 0x4, offset = 0x4, fixed_abs, tag = 'smem constant byte address 0x4 - core index']
  #allocation1 [shape = 'u32[144,128]{1,0:T(1,128)}', space=vmem, size = 0x12000, scoped, tag = 'internal scratch']
  %s0 = inlined_call_operand.vmem [shape: f32[2,8,128], index: 0, kind: input, shape index: {}]
  %s1 = inlined_call_operand.vmem [shape: f32[2,128,8], index: 1, kind: input, shape index: {}]
  %s2 = inlined_call_operand.vmem [shape: f32[2,4,1], index: 2, kind: input, shape index: {}]
  %s3 = inlined_call_operand.vmem [shape: f32[2,4,128], index: 3, kind: output, shape index: {0}]
  %s4 = inlined_call_operand.vmem [shape: f32[2,128,128], index: 4, kind: output, shape index: {1}]
  %5 = xla_tuple %s3, %s4
  %s6 = sld [smem:[#allocation0]]
  $region53: #{_forward_impl.1} parent=0
    _
  %s8 = ssub.s32 1, %s6
  %s9 = scalar_select 0, %s8, %s6
  loop: start=0, step=1, limit=4
  $region2: #{_forward_impl.1} parent=0 // loop_pre_header
    _
  $region3: #{_forward_impl.1} parent=0 // loop_header
    %s11 = sphi 0, %s15
    %p12 = scmp.ge.s32.totalorder %s11, 4
    %s18 = sphi 0, %s30
    %s19 = sphi 0, %s26
    %s20 = sphi 0, %s18
    %s21 = sphi 0, %s19
    %s22 = sphi 0, %s20
    %s23 = sphi 0, %s21
    %s33 = sphi 0, %s35
    %s36 = sphi 0, %s33
    %s37 = sphi 0, %s36
    %s53 = sphi 0, %s37
    %s59 = sphi 0, %s61
    %s62 = sphi 0, %s59
    %s63 = sphi 0, %s62
    %s79 = sphi 0, %s63
    %s85 = sphi 0, %s87
    %s88 = sphi 0, %s85
    %s89 = sphi 0, %s88
    %s105 = sphi 0, %s89
    %s113 = sphi 0, %s115
    %s116 = sphi 0, %s113
    %s117 = sphi 0, %s116
    %s133 = sphi 0, %s117
    %s141 = sphi 0, %s143
    %s144 = sphi 0, %s141
    %s145 = sphi 0, %s144
    %s161 = sphi 0, %s145
  $region4: #{_forward_impl.1} parent=0 // loop_header_branch
    %14 = sbr.rel (%p12) target = $region8
  $region5: #{_forward_impl.1} parent=0 // loop_body
    %s16 = ssub.s32 %s11, 1
    %s17 = ssub.s32 %s11, 2
    %s24 = sadd.s32 1, %s19
    %p25 = scmp.ge.s32.totalorder %s24, 1
    %s26 = scalar_select %p25, 0, %s24
    %s27 = sadd.s32 1, %s18
    %s28 = scalar_select %p25, %s27, %s18
    %p29 = scmp.ge.s32.totalorder %s28, 2
    %s30 = scalar_select %p29, 0, %s28
    %s31 = ssub.s32 %s18, %s30
    %p32 = scmp.eq.s32.totalorder %s31, 0
    %s34 = sadd.s32 %s33, 1
    %s35 = scalar_select %p32, %s33, %s34
    %p38 = pneg %p32
    %p39 = scmp.eq.s32.totalorder %s11, 1
    %p40 = por %p38, %p39
    %p41 = scmp.ne.s32.totalorder %s33, %s36
    %p42 = scmp.eq.s32.totalorder %s11, 0
    %p43 = por %p41, %p42
    %p44 = scmp.ne.s32.totalorder %s33, %s36
    %p45 = scmp.eq.s32.totalorder %s16, 1
    %p46 = por %p44, %p45
    %p47 = scmp.ne.s32.totalorder %s36, %s37
    %p48 = scmp.eq.s32.totalorder %s16, 0
    %p49 = por %p47, %p48
    %p50 = scmp.ne.s32.totalorder %s36, %s37
    %p51 = scmp.eq.s32.totalorder %s17, 1
    %p52 = por %p50, %p51
    %p54 = scmp.ne.s32.totalorder %s37, %s53
    %p55 = scmp.eq.s32.totalorder %s17, 0
    %p56 = por %p54, %p55
    %s57 = ssub.s32 %s18, %s30
    %p58 = scmp.eq.s32.totalorder %s57, 0
    %s60 = sadd.s32 %s59, 1
    %s61 = scalar_select %p58, %s59, %s60
    %p64 = pneg %p58
    %p65 = scmp.eq.s32.totalorder %s11, 1
    %p66 = por %p64, %p65
    %p67 = scmp.ne.s32.totalorder %s59, %s62
    %p68 = scmp.eq.s32.totalorder %s11, 0
    %p69 = por %p67, %p68
    %p70 = scmp.ne.s32.totalorder %s59, %s62
    %p71 = scmp.eq.s32.totalorder %s16, 1
    %p72 = por %p70, %p71
    %p73 = scmp.ne.s32.totalorder %s62, %s63
    %p74 = scmp.eq.s32.totalorder %s16, 0
    %p75 = por %p73, %p74
    %p76 = scmp.ne.s32.totalorder %s62, %s63
    %p77 = scmp.eq.s32.totalorder %s17, 1
    %p78 = por %p76, %p77
    %p80 = scmp.ne.s32.totalorder %s63, %s79
    %p81 = scmp.eq.s32.totalorder %s17, 0
    %p82 = por %p80, %p81
    %s83 = ssub.s32 %s18, %s30
    %p84 = scmp.eq.s32.totalorder %s83, 0
    %s86 = sadd.s32 %s85, 1
    %s87 = scalar_select %p84, %s85, %s86
    %p90 = pneg %p84
    %p91 = scmp.eq.s32.totalorder %s11, 1
    %p92 = por %p90, %p91
    %p93 = scmp.ne.s32.totalorder %s85, %s88
    %p94 = scmp.eq.s32.totalorder %s11, 0
    %p95 = por %p93, %p94
    %p96 = scmp.ne.s32.totalorder %s85, %s88
    %p97 = scmp.eq.s32.totalorder %s16, 1
    %p98 = por %p96, %p97
    %p99 = scmp.ne.s32.totalorder %s88, %s89
    %p100 = scmp.eq.s32.totalorder %s16, 0
    %p101 = por %p99, %p100
    %p102 = scmp.ne.s32.totalorder %s88, %s89
    %p103 = scmp.eq.s32.totalorder %s17, 1
    %p104 = por %p102, %p103
    %p106 = scmp.ne.s32.totalorder %s89, %s105
    %p107 = scmp.eq.s32.totalorder %s17, 0
    %p108 = por %p106, %p107
    %s109 = ssub.s32 %s18, %s30
    %s110 = ssub.s32 %s19, %s26
    %s111 = sor.u32 %s109, %s110
    %p112 = scmp.eq.s32.totalorder %s111, 0
    %s114 = sadd.s32 %s113, 1
    %s115 = scalar_select %p112, %s113, %s114
    %p118 = pneg %p112
    %p119 = scmp.eq.s32.totalorder %s11, 1
    %p120 = por %p118, %p119
    %p121 = scmp.ne.s32.totalorder %s113, %s116
    %p122 = scmp.eq.s32.totalorder %s11, 0
    %p123 = por %p121, %p122
    %p124 = scmp.ne.s32.totalorder %s113, %s116
    %p125 = scmp.eq.s32.totalorder %s16, 1
    %p126 = por %p124, %p125
    %p127 = scmp.ne.s32.totalorder %s116, %s117
    %p128 = scmp.eq.s32.totalorder %s16, 0
    %p129 = por %p127, %p128
    %p130 = scmp.ne.s32.totalorder %s116, %s117
    %p131 = scmp.eq.s32.totalorder %s17, 1
    %p132 = por %p130, %p131
    %p134 = scmp.ne.s32.totalorder %s117, %s133
    %p135 = scmp.eq.s32.totalorder %s17, 0
    %p136 = por %p134, %p135
    %s137 = ssub.s32 %s18, %s30
    %s138 = ssub.s32 %s19, %s26
    %s139 = sor.u32 %s137, %s138
    %p140 = scmp.eq.s32.totalorder %s139, 0
    %s142 = sadd.s32 %s141, 1
    %s143 = scalar_select %p140, %s141, %s142
    %p146 = pneg %p140
    %p147 = scmp.eq.s32.totalorder %s11, 1
    %p148 = por %p146, %p147
    %p149 = scmp.ne.s32.totalorder %s141, %s144
    %p150 = scmp.eq.s32.totalorder %s11, 0
    %p151 = por %p149, %p150
    %p152 = scmp.ne.s32.totalorder %s141, %s144
    %p153 = scmp.eq.s32.totalorder %s16, 1
    %p154 = por %p152, %p153
    %p155 = scmp.ne.s32.totalorder %s144, %s145
    %p156 = scmp.eq.s32.totalorder %s16, 0
    %p157 = por %p155, %p156
    %p158 = scmp.ne.s32.totalorder %s144, %s145
    %p159 = scmp.eq.s32.totalorder %s17, 1
    %p160 = por %p158, %p159
    %p162 = scmp.ne.s32.totalorder %s145, %s161
    %p163 = scmp.eq.s32.totalorder %s17, 0
    %p164 = por %p162, %p163
    %p165 = scmp.le.s32.totalorder 1, %s11
    %p166 = scmp.lt.s32.totalorder %s11, 3
    %p167 = pnand %p165, %p166
    %p168 = pneg %p167
    // Predicated region
    $region9: #{_forward_impl.1} parent=5 // pred_check
      _
    $region10: #{_forward_impl.1} parent=5 // pred_check_branch
      %170 = sbr.rel (%p167) target = $region12
    $region11: #{_forward_impl.1} parent=5 // pred_region
      %s171 = ssub.s32 %s11, 1
    $region12: #{_forward_impl.1} parent=5 // pred_fallthru
      _
    %p172 = scmp.lt.s32.totalorder %s11, 2
    // Predicated region
    $region13: #{_forward_impl.1} parent=5 // pred_check
      %p173 = pneg %p172
    $region14: #{_forward_impl.1} parent=5 // pred_check_branch
      %175 = sbr.rel (%p173) target = $region16
    $region15: #{_forward_impl.1} parent=5 // pred_region
      // Predicated region
      $region17: #{_forward_impl.1} parent=15 // pred_check
        %p176 = pneg %p43
      $region18: #{_forward_impl.1} parent=15 // pred_check_branch
        %178 = sbr.rel (%p176) target = $region20
      $region19: #{_forward_impl.1} parent=15 // pred_region
        %p179 = scmp.lt.s32.totalorder %s18, 1
        %s180 = scalar_select %p179, %s18, 1
        %s181 = smul.addr %s180, 8
        %s182 = scalar_lea.vmem %s0, %s181
      $region20: #{_forward_impl.1} parent=15 // pred_fallthru
        _
      // Predicated region
      $region21: #{_forward_impl.1} parent=15 // pred_check
        %p183 = pneg %p69
      $region22: #{_forward_impl.1} parent=15 // pred_check_branch
        %185 = sbr.rel (%p183) target = $region24
      $region23: #{_forward_impl.1} parent=15 // pred_region
        %p186 = scmp.lt.s32.totalorder %s18, 1
        %s187 = scalar_select %p186, %s18, 1
        %s188 = smul.addr %s187, 16
        %s189 = smul.addr %s188, 8
        %s190 = scalar_lea.vmem %s1, %s189
      $region24: #{_forward_impl.1} parent=15 // pred_fallthru
        _
      // Predicated region
      $region25: #{_forward_impl.1} parent=15 // pred_check
        %p191 = pneg %p95
      $region26: #{_forward_impl.1} parent=15 // pred_check_branch
        %193 = sbr.rel (%p191) target = $region28
      $region27: #{_forward_impl.1} parent=15 // pred_region
        %p194 = scmp.lt.s32.totalorder %s18, 1
        %s195 = scalar_select %p194, %s18, 1
        %s196 = smul.addr %s195, 4
        %s197 = scalar_lea.vmem %s2, %s196
      $region28: #{_forward_impl.1} parent=15 // pred_fallthru
        _
    $region16: #{_forward_impl.1} parent=5 // pred_fallthru
      _
    %p198 = scmp.le.s32.totalorder 1, %s11
    %p199 = scmp.lt.s32.totalorder %s11, 3
    %p200 = pnand %p198, %p199
    %p201 = pneg %p200
    // Predicated region
    $region29: #{_forward_impl.1} parent=5 // pred_check
      _
    $region30: #{_forward_impl.1} parent=5 // pred_check_branch
      %203 = sbr.rel (%p200) target = $region32
    $region31: #{_forward_impl.1} parent=5 // pred_region
      %s204 = ssub.s32 %s11, 1
      %p205 = scmp.lt.s32.totalorder %s20, 1
      %s206 = scalar_select %p205, %s20, 1
      %s207 = smul.addr %s206, 8
      %s208 = scalar_lea.vmem %s0, %s207
      %p209 = pneg %p49
      %p210 = pneg %p46
      %p211 = scmp.lt.s32.totalorder %s20, 1
      %s212 = scalar_select %p211, %s20, 1
      %s213 = smul.addr %s212, 16
      %s214 = smul.addr %s213, 8
      %s215 = scalar_lea.vmem %s1, %s214
      %p216 = pneg %p75
      %p217 = pneg %p72
      %p218 = scmp.lt.s32.totalorder %s20, 1
      %s219 = scalar_select %p218, %s20, 1
      %s220 = smul.addr %s219, 4
      %s221 = scalar_lea.vmem %s2, %s220
      %p222 = pneg %p101
      %p223 = pneg %p98
      %p224 = pneg %p129
      %p225 = pneg %p126
      %p226 = scmp.lt.s32.totalorder %s20, 1
      %s227 = scalar_select %p226, %s20, 1
      %p228 = scmp.lt.s32.totalorder %s21, 0
      %s229 = scalar_select %p228, %s21, 0
      %s230 = sadd.s32 %s229, %s227
      %s231 = smul.addr %s230, 4
      %s232 = scalar_lea.vmem %s3, %s231
      %p233 = pneg %p157
      %p234 = pneg %p154
      %p235 = scmp.lt.s32.totalorder %s20, 1
      %s236 = scalar_select %p235, %s20, 1
      %p237 = scmp.lt.s32.totalorder %s21, 0
      %s238 = scalar_select %p237, %s21, 0
      %s239 = smul.addr %s236, 16
      %s240 = sadd.s32 %s238, %s239
      %s241 = smul.addr %s240, 8
      %s242 = scalar_lea.vmem %s4, %s241
      %p243 = scmp.lt.s32.totalorder %s20, 1
      %s244 = scalar_select %p243, %s20, 1
      %s245 = smul.addr %s244, 8
      %s246 = scalar_lea.vmem %s0, %s245
      %p247 = scmp.lt.s32.totalorder %s20, 1
      %s248 = scalar_select %p247, %s20, 1
      %s249 = smul.addr %s248, 16
      %s250 = smul.addr %s249, 8
      %s251 = scalar_lea.vmem %s1, %s250
      %p252 = scmp.lt.s32.totalorder %s20, 1
      %s253 = scalar_select %p252, %s20, 1
      %s254 = smul.addr %s253, 4
      %s255 = scalar_lea.vmem %s2, %s254
      %p256 = scmp.lt.s32.totalorder %s20, 1
      %s257 = scalar_select %p256, %s20, 1
      %p258 = scmp.lt.s32.totalorder %s21, 0
      %s259 = scalar_select %p258, %s21, 0
      %s260 = sadd.s32 %s259, %s257
      %s261 = smul.addr %s260, 4
      %s262 = scalar_lea.vmem %s3, %s261
      %p263 = scmp.lt.s32.totalorder %s20, 1
      %s264 = scalar_select %p263, %s20, 1
      %p265 = scmp.lt.s32.totalorder %s21, 0
      %s266 = scalar_select %p265, %s21, 0
      %s267 = smul.addr %s264, 16
      %s268 = sadd.s32 %s266, %s267
      %s269 = smul.addr %s268, 8
      %s270 = scalar_lea.vmem %s4, %s269
      %v271 = vld [vmem:[%s255] sm:$0xf]
      %v272 = vld [vmem:[%s246] sm:$0xff]
      %v274 = vrot.slane %v272, 6
      %v276 = vmul.f32 %v272, %v274
      %v277 = vrot.slane %v272, 4
      %v279 = vadd.f32 %v276, %v277
      %v280 = vmul.f32 %v272, 1.442695
      %v281 = vpow.pop %v280
      %v282 = vmul.f32 %v281, %v277
      %v283 = vmul.f32 %v282, 0.5
      %v285 = vrot.slane %v283, 2
      %v287 = vsub.f32 %v279, %v285
      %v288 = vadd.f32 %v279, %v285
      %v290 = vrot.slane %v287, 4
      %v293 = vrot.slane %v288, 2
      %vm295 = vcmask 1041408
      %v296 = vsel %vm295, %v290, %v293
      %v297 = vmax.f32 %v296, 0.0
      %299 = vset.pattern.permute.xlu0 0
      %300 = vperm.xlu0 %299, %v271
      %v301 = vpop.permute.xlu0 %300
      %v303 = vmin.f32 %v301, %v297
      %304 = vst [vmem:[%s262] sm:$0xf] %v303
      %v305 = vld [vmem:[%s251] sm:$0xff]
      %v306 = vld [vmem:[%s251 + $0x8] sm:$0xff]
      %v307 = vld [vmem:[%s251 + $0x10] sm:$0xff]
      %v308 = vld [vmem:[%s251 + $0x18] sm:$0xff]
      %v309 = vld [vmem:[%s251 + $0x20] sm:$0xff]
      %v310 = vld [vmem:[%s251 + $0x28] sm:$0xff]
      %v311 = vld [vmem:[%s251 + $0x30] sm:$0xff]
      %v312 = vld [vmem:[%s251 + $0x38] sm:$0xff]
      %v313 = vld [vmem:[%s251 + $0x40] sm:$0xff]
      %v314 = vld [vmem:[%s251 + $0x48] sm:$0xff]
      %v315 = vld [vmem:[%s251 + $0x50] sm:$0xff]
      %v316 = vld [vmem:[%s251 + $0x58] sm:$0xff]
      %v317 = vld [vmem:[%s251 + $0x60] sm:$0xff]
      %v318 = vld [vmem:[%s251 + $0x68] sm:$0xff]
      %v319 = vld [vmem:[%s251 + $0x70] sm:$0xff]
      %v320 = vld [vmem:[%s251 + $0x78] sm:$0xff]
      %337 = vrot.lane.b32.xlu0 %v305, 2
      %v338 = vpop.permute.xlu0 %337
      %339 = vrot.lane.b32.xlu0 %v306, 2
      %v340 = vpop.permute.xlu0 %339
      %341 = vrot.lane.b32.xlu0 %v307, 2
      %v342 = vpop.permute.xlu0 %341
      %343 = vrot.lane.b32.xlu0 %v308, 2
      %v344 = vpop.permute.xlu0 %343
      %345 = vrot.lane.b32.xlu0 %v309, 2
      %v346 = vpop.permute.xlu0 %345
      %347 = vrot.lane.b32.xlu0 %v310, 2
      %v348 = vpop.permute.xlu0 %347
      %349 = vrot.lane.b32.xlu0 %v311, 2
      %v350 = vpop.permute.xlu0 %349
      %351 = vrot.lane.b32.xlu0 %v312, 2
      %v352 = vpop.permute.xlu0 %351
      %353 = vrot.lane.b32.xlu0 %v313, 2
      %v354 = vpop.permute.xlu0 %353
      %355 = vrot.lane.b32.xlu0 %v314, 2
      %v356 = vpop.permute.xlu0 %355
      %357 = vrot.lane.b32.xlu0 %v315, 2
      %v358 = vpop.permute.xlu0 %357
      %359 = vrot.lane.b32.xlu0 %v316, 2
      %v360 = vpop.permute.xlu0 %359
      %361 = vrot.lane.b32.xlu0 %v317, 2
      %v362 = vpop.permute.xlu0 %361
      %363 = vrot.lane.b32.xlu0 %v318, 2
      %v364 = vpop.permute.xlu0 %363
      %365 = vrot.lane.b32.xlu0 %v319, 2
      %v366 = vpop.permute.xlu0 %365
      %367 = vrot.lane.b32.xlu0 %v320, 2
      %v368 = vpop.permute.xlu0 %367
      %v385 = vmul.f32 %v305, %v338
      %v386 = vmul.f32 %v306, %v340
      %v387 = vmul.f32 %v307, %v342
      %v388 = vmul.f32 %v308, %v344
      %v389 = vmul.f32 %v309, %v346
      %v390 = vmul.f32 %v310, %v348
      %v391 = vmul.f32 %v311, %v350
      %v392 = vmul.f32 %v312, %v352
      %v393 = vmul.f32 %v313, %v354
      %v394 = vmul.f32 %v314, %v356
      %v395 = vmul.f32 %v315, %v358
      %v396 = vmul.f32 %v316, %v360
      %v397 = vmul.f32 %v317, %v362
      %v398 = vmul.f32 %v318, %v364
      %v399 = vmul.f32 %v319, %v366
      %v400 = vmul.f32 %v320, %v368
      %401 = vrot.lane.b32.xlu0 %v305, 4
      %v402 = vpop.permute.xlu0 %401
      %403 = vrot.lane.b32.xlu0 %v306, 4
      %v404 = vpop.permute.xlu0 %403
      %405 = vrot.lane.b32.xlu0 %v307, 4
      %v406 = vpop.permute.xlu0 %405
      %407 = vrot.lane.b32.xlu0 %v308, 4
      %v408 = vpop.permute.xlu0 %407
      %409 = vrot.lane.b32.xlu0 %v309, 4
      %v410 = vpop.permute.xlu0 %409
      %411 = vrot.lane.b32.xlu0 %v310, 4
      %v412 = vpop.permute.xlu0 %411
      %413 = vrot.lane.b32.xlu0 %v311, 4
      %v414 = vpop.permute.xlu0 %413
      %415 = vrot.lane.b32.xlu0 %v312, 4
      %v416 = vpop.permute.xlu0 %415
      %417 = vrot.lane.b32.xlu0 %v313, 4
      %v418 = vpop.permute.xlu0 %417
      %419 = vrot.lane.b32.xlu0 %v314, 4
      %v420 = vpop.permute.xlu0 %419
      %421 = vrot.lane.b32.xlu0 %v315, 4
      %v422 = vpop.permute.xlu0 %421
      %423 = vrot.lane.b32.xlu0 %v316, 4
      %v424 = vpop.permute.xlu0 %423
      %425 = vrot.lane.b32.xlu0 %v317, 4
      %v426 = vpop.permute.xlu0 %425
      %427 = vrot.lane.b32.xlu0 %v318, 4
      %v428 = vpop.permute.xlu0 %427
      %429 = vrot.lane.b32.xlu0 %v319, 4
      %v430 = vpop.permute.xlu0 %429
      %431 = vrot.lane.b32.xlu0 %v320, 4
      %v432 = vpop.permute.xlu0 %431
      %v449 = vadd.f32 %v385, %v402
      %v450 = vadd.f32 %v386, %v404
      %v451 = vadd.f32 %v387, %v406
      %v452 = vadd.f32 %v388, %v408
      %v453 = vadd.f32 %v389, %v410
      %v454 = vadd.f32 %v390, %v412
      %v455 = vadd.f32 %v391, %v414
      %v456 = vadd.f32 %v392, %v416
      %v457 = vadd.f32 %v393, %v418
      %v458 = vadd.f32 %v394, %v420
      %v459 = vadd.f32 %v395, %v422
      %v460 = vadd.f32 %v396, %v424
      %v461 = vadd.f32 %v397, %v426
      %v462 = vadd.f32 %v398, %v428
      %v463 = vadd.f32 %v399, %v430
      %v464 = vadd.f32 %v400, %v432
      %v465 = vmul.f32 %v305, 1.442695
      %v466 = vpow.pop %v465
      %v467 = vmul.f32 %v306, 1.442695
      %v468 = vpow.pop %v467
      %v469 = vmul.f32 %v307, 1.442695
      %v470 = vpow.pop %v469
      %v471 = vmul.f32 %v308, 1.442695
      %v472 = vpow.pop %v471
      %v473 = vmul.f32 %v309, 1.442695
      %v474 = vpow.pop %v473
      %v475 = vmul.f32 %v310, 1.442695
      %v476 = vpow.pop %v475
      %v477 = vmul.f32 %v311, 1.442695
      %v478 = vpow.pop %v477
      %v479 = vmul.f32 %v312, 1.442695
      %v480 = vpow.pop %v479
      %v481 = vmul.f32 %v313, 1.442695
      %v482 = vpow.pop %v481
      %v483 = vmul.f32 %v314, 1.442695
      %v484 = vpow.pop %v483
      %v485 = vmul.f32 %v315, 1.442695
      %v486 = vpow.pop %v485
      %v487 = vmul.f32 %v316, 1.442695
      %v488 = vpow.pop %v487
      %v489 = vmul.f32 %v317, 1.442695
      %v490 = vpow.pop %v489
      %v491 = vmul.f32 %v318, 1.442695
      %v492 = vpow.pop %v491
      %v493 = vmul.f32 %v319, 1.442695
      %v494 = vpow.pop %v493
      %v495 = vmul.f32 %v320, 1.442695
      %v496 = vpow.pop %v495
      %v497 = vmul.f32 %v466, %v402
      %v498 = vmul.f32 %v468, %v404
      %v499 = vmul.f32 %v470, %v406
      %v500 = vmul.f32 %v472, %v408
      %v501 = vmul.f32 %v474, %v410
      %v502 = vmul.f32 %v476, %v412
      %v503 = vmul.f32 %v478, %v414
      %v504 = vmul.f32 %v480, %v416
      %v505 = vmul.f32 %v482, %v418
      %v506 = vmul.f32 %v484, %v420
      %v507 = vmul.f32 %v486, %v422
      %v508 = vmul.f32 %v488, %v424
      %v509 = vmul.f32 %v490, %v426
      %v510 = vmul.f32 %v492, %v428
      %v511 = vmul.f32 %v494, %v430
      %v512 = vmul.f32 %v496, %v432
      %v513 = vmul.f32 %v497, 0.5
      %v514 = vmul.f32 %v498, 0.5
      %v515 = vmul.f32 %v499, 0.5
      %v516 = vmul.f32 %v500, 0.5
      %v517 = vmul.f32 %v501, 0.5
      %v518 = vmul.f32 %v502, 0.5
      %v519 = vmul.f32 %v503, 0.5
      %v520 = vmul.f32 %v504, 0.5
      %v521 = vmul.f32 %v505, 0.5
      %v522 = vmul.f32 %v506, 0.5
      %v523 = vmul.f32 %v507, 0.5
      %v524 = vmul.f32 %v508, 0.5
      %v525 = vmul.f32 %v509, 0.5
      %v526 = vmul.f32 %v510, 0.5
      %v527 = vmul.f32 %v511, 0.5
      %v528 = vmul.f32 %v512, 0.5
      %545 = vrot.lane.b32.xlu0 %v513, 126
      %v546 = vpop.permute.xlu0 %545
      %547 = vrot.lane.b32.xlu0 %v514, 126
      %v548 = vpop.permute.xlu0 %547
      %549 = vrot.lane.b32.xlu0 %v515, 126
      %v550 = vpop.permute.xlu0 %549
      %551 = vrot.lane.b32.xlu0 %v516, 126
      %v552 = vpop.permute.xlu0 %551
      %553 = vrot.lane.b32.xlu0 %v517, 126
      %v554 = vpop.permute.xlu0 %553
      %555 = vrot.lane.b32.xlu0 %v518, 126
      %v556 = vpop.permute.xlu0 %555
      %557 = vrot.lane.b32.xlu0 %v519, 126
      %v558 = vpop.permute.xlu0 %557
      %559 = vrot.lane.b32.xlu0 %v520, 126
      %v560 = vpop.permute.xlu0 %559
      %561 = vrot.lane.b32.xlu0 %v521, 126
      %v562 = vpop.permute.xlu0 %561
      %563 = vrot.lane.b32.xlu0 %v522, 126
      %v564 = vpop.permute.xlu0 %563
      %565 = vrot.lane.b32.xlu0 %v523, 126
      %v566 = vpop.permute.xlu0 %565
      %567 = vrot.lane.b32.xlu0 %v524, 126
      %v568 = vpop.permute.xlu0 %567
      %569 = vrot.lane.b32.xlu0 %v525, 126
      %v570 = vpop.permute.xlu0 %569
      %571 = vrot.lane.b32.xlu0 %v526, 126
      %v572 = vpop.permute.xlu0 %571
      %573 = vrot.lane.b32.xlu0 %v527, 126
      %v574 = vpop.permute.xlu0 %573
      %575 = vrot.lane.b32.xlu0 %v528, 126
      %v576 = vpop.permute.xlu0 %575
      %v593 = vsub.f32 %v449, %v546
      %v594 = vsub.f32 %v450, %v548
      %v595 = vsub.f32 %v451, %v550
      %v596 = vsub.f32 %v452, %v552
      %v597 = vsub.f32 %v453, %v554
      %v598 = vsub.f32 %v454, %v556
      %v599 = vsub.f32 %v455, %v558
      %v600 = vsub.f32 %v456, %v560
      %v601 = vsub.f32 %v457, %v562
      %v602 = vsub.f32 %v458, %v564
      %v603 = vsub.f32 %v459, %v566
      %v604 = vsub.f32 %v460, %v568
      %v605 = vsub.f32 %v461, %v570
      %v606 = vsub.f32 %v462, %v572
      %v607 = vsub.f32 %v463, %v574
      %v608 = vsub.f32 %v464, %v576
      %v609 = vmax.f32 %v593, 0.0
      %v610 = vmax.f32 %v594, 0.0
      %v611 = vmax.f32 %v595, 0.0
      %v612 = vmax.f32 %v596, 0.0
      %v613 = vmax.f32 %v597, 0.0
      %v614 = vmax.f32 %v598, 0.0
      %v615 = vmax.f32 %v599, 0.0
      %v616 = vmax.f32 %v600, 0.0
      %v617 = vmax.f32 %v601, 0.0
      %v618 = vmax.f32 %v602, 0.0
      %v619 = vmax.f32 %v603, 0.0
      %v620 = vmax.f32 %v604, 0.0
      %v621 = vmax.f32 %v605, 0.0
      %v622 = vmax.f32 %v606, 0.0
      %v623 = vmax.f32 %v607, 0.0
      %v624 = vmax.f32 %v608, 0.0
      %v625 = vlaneseq
      %v626 = vshrl.u32 %v625, 7
      %v627 = vsub.s32 0, %v626
      %v628 = vrot.slane %v271, %v627
      %645 = vrot.lane.b32.xlu0 %v609, 124
      %v646 = vpop.permute.xlu0 %645
      %647 = vrot.lane.b32.xlu0 %v610, 124
      %v648 = vpop.permute.xlu0 %647
      %649 = vrot.lane.b32.xlu0 %v611, 124
      %v650 = vpop.permute.xlu0 %649
      %651 = vrot.lane.b32.xlu0 %v612, 124
      %v652 = vpop.permute.xlu0 %651
      %653 = vrot.lane.b32.xlu0 %v613, 124
      %v654 = vpop.permute.xlu0 %653
      %655 = vrot.lane.b32.xlu0 %v614, 124
      %v656 = vpop.permute.xlu0 %655
      %657 = vrot.lane.b32.xlu0 %v615, 124
      %v658 = vpop.permute.xlu0 %657
      %659 = vrot.lane.b32.xlu0 %v616, 124
      %v660 = vpop.permute.xlu0 %659
      %661 = vrot.lane.b32.xlu0 %v617, 124
      %v662 = vpop.permute.xlu0 %661
      %663 = vrot.lane.b32.xlu0 %v618, 124
      %v664 = vpop.permute.xlu0 %663
      %665 = vrot.lane.b32.xlu0 %v619, 124
      %v666 = vpop.permute.xlu0 %665
      %667 = vrot.lane.b32.xlu0 %v620, 124
      %v668 = vpop.permute.xlu0 %667
      %669 = vrot.lane.b32.xlu0 %v621, 124
      %v670 = vpop.permute.xlu0 %669
      %671 = vrot.lane.b32.xlu0 %v622, 124
      %v672 = vpop.permute.xlu0 %671
      %673 = vrot.lane.b32.xlu0 %v623, 124
      %v674 = vpop.permute.xlu0 %673
      %675 = vrot.lane.b32.xlu0 %v624, 124
      %v676 = vpop.permute.xlu0 %675
      %v693 = vmin.f32 %v628, %v646
      %v694 = vmin.f32 %v628, %v648
      %v695 = vmin.f32 %v628, %v650
      %v696 = vmin.f32 %v628, %v652
      %v697 = vmin.f32 %v628, %v654
      %v698 = vmin.f32 %v628, %v656
      %v699 = vmin.f32 %v628, %v658
      %v700 = vmin.f32 %v628, %v660
      %v701 = vmin.f32 %v628, %v662
      %v702 = vmin.f32 %v628, %v664
      %v703 = vmin.f32 %v628, %v666
      %v704 = vmin.f32 %v628, %v668
      %v705 = vmin.f32 %v628, %v670
      %v706 = vmin.f32 %v628, %v672
      %v707 = vmin.f32 %v628, %v674
      %v708 = vmin.f32 %v628, %v676
      %v709 = vlaneseq
      %v710 = vshrl.u32 %v709, 7
      %v711 = vsub.s32 1, %v710
      %v712 = vrot.slane %v271, %v711
      %713 = vrot.lane.b32.xlu0 %v609, 123
      %v714 = vpop.permute.xlu0 %713
      %715 = vrot.lane.b32.xlu0 %v610, 123
      %v716 = vpop.permute.xlu0 %715
      %717 = vrot.lane.b32.xlu0 %v611, 123
      %v718 = vpop.permute.xlu0 %717
      %719 = vrot.lane.b32.xlu0 %v612, 123
      %v720 = vpop.permute.xlu0 %719
      %721 = vrot.lane.b32.xlu0 %v613, 123
      %v722 = vpop.permute.xlu0 %721
      %723 = vrot.lane.b32.xlu0 %v614, 123
      %v724 = vpop.permute.xlu0 %723
      %725 = vrot.lane.b32.xlu0 %v615, 123
      %v726 = vpop.permute.xlu0 %725
      %727 = vrot.lane.b32.xlu0 %v616, 123
      %v728 = vpop.permute.xlu0 %727
      %729 = vrot.lane.b32.xlu0 %v617, 123
      %v730 = vpop.permute.xlu0 %729
      %731 = vrot.lane.b32.xlu0 %v618, 123
      %v732 = vpop.permute.xlu0 %731
      %733 = vrot.lane.b32.xlu0 %v619, 123
      %v734 = vpop.permute.xlu0 %733
      %735 = vrot.lane.b32.xlu0 %v620, 123
      %v736 = vpop.permute.xlu0 %735
      %737 = vrot.lane.b32.xlu0 %v621, 123
      %v738 = vpop.permute.xlu0 %737
      %739 = vrot.lane.b32.xlu0 %v622, 123
      %v740 = vpop.permute.xlu0 %739
      %741 = vrot.lane.b32.xlu0 %v623, 123
      %v742 = vpop.permute.xlu0 %741
      %743 = vrot.lane.b32.xlu0 %v624, 123
      %v744 = vpop.permute.xlu0 %743
      %v761 = vmin.f32 %v712, %v714
      %v762 = vmin.f32 %v712, %v716
      %v763 = vmin.f32 %v712, %v718
      %v764 = vmin.f32 %v712, %v720
      %v765 = vmin.f32 %v712, %v722
      %v766 = vmin.f32 %v712, %v724
      %v767 = vmin.f32 %v712, %v726
      %v768 = vmin.f32 %v712, %v728
      %v769 = vmin.f32 %v712, %v730
      %v770 = vmin.f32 %v712, %v732
      %v771 = vmin.f32 %v712, %v734
      %v772 = vmin.f32 %v712, %v736
      %v773 = vmin.f32 %v712, %v738
      %v774 = vmin.f32 %v712, %v740
      %v775 = vmin.f32 %v712, %v742
      %v776 = vmin.f32 %v712, %v744
      %v777 = vadd.f32 %v449, %v546
      %v778 = vadd.f32 %v450, %v548
      %v779 = vadd.f32 %v451, %v550
      %v780 = vadd.f32 %v452, %v552
      %v781 = vadd.f32 %v453, %v554
      %v782 = vadd.f32 %v454, %v556
      %v783 = vadd.f32 %v455, %v558
      %v784 = vadd.f32 %v456, %v560
      %v785 = vadd.f32 %v457, %v562
      %v786 = vadd.f32 %v458, %v564
      %v787 = vadd.f32 %v459, %v566
      %v788 = vadd.f32 %v460, %v568
      %v789 = vadd.f32 %v461, %v570
      %v790 = vadd.f32 %v462, %v572
      %v791 = vadd.f32 %v463, %v574
      %v792 = vadd.f32 %v464, %v576
      %v793 = vmax.f32 %v777, 0.0
      %v794 = vmax.f32 %v778, 0.0
      %v795 = vmax.f32 %v779, 0.0
      %v796 = vmax.f32 %v780, 0.0
      %v797 = vmax.f32 %v781, 0.0
      %v798 = vmax.f32 %v782, 0.0
      %v799 = vmax.f32 %v783, 0.0
      %v800 = vmax.f32 %v784, 0.0
      %v801 = vmax.f32 %v785, 0.0
      %v802 = vmax.f32 %v786, 0.0
      %v803 = vmax.f32 %v787, 0.0
      %v804 = vmax.f32 %v788, 0.0
      %v805 = vmax.f32 %v789, 0.0
      %v806 = vmax.f32 %v790, 0.0
      %v807 = vmax.f32 %v791, 0.0
      %v808 = vmax.f32 %v792, 0.0
      %825 = vrot.lane.b32.xlu0 %v793, 124
      %v826 = vpop.permute.xlu0 %825
      %827 = vrot.lane.b32.xlu0 %v794, 124
      %v828 = vpop.permute.xlu0 %827
      %829 = vrot.lane.b32.xlu0 %v795, 124
      %v830 = vpop.permute.xlu0 %829
      %831 = vrot.lane.b32.xlu0 %v796, 124
      %v832 = vpop.permute.xlu0 %831
      %833 = vrot.lane.b32.xlu0 %v797, 124
      %v834 = vpop.permute.xlu0 %833
      %835 = vrot.lane.b32.xlu0 %v798, 124
      %v836 = vpop.permute.xlu0 %835
      %837 = vrot.lane.b32.xlu0 %v799, 124
      %v838 = vpop.permute.xlu0 %837
      %839 = vrot.lane.b32.xlu0 %v800, 124
      %v840 = vpop.permute.xlu0 %839
      %841 = vrot.lane.b32.xlu0 %v801, 124
      %v842 = vpop.permute.xlu0 %841
      %843 = vrot.lane.b32.xlu0 %v802, 124
      %v844 = vpop.permute.xlu0 %843
      %845 = vrot.lane.b32.xlu0 %v803, 124
      %v846 = vpop.permute.xlu0 %845
      %847 = vrot.lane.b32.xlu0 %v804, 124
      %v848 = vpop.permute.xlu0 %847
      %849 = vrot.lane.b32.xlu0 %v805, 124
      %v850 = vpop.permute.xlu0 %849
      %851 = vrot.lane.b32.xlu0 %v806, 124
      %v852 = vpop.permute.xlu0 %851
      %853 = vrot.lane.b32.xlu0 %v807, 124
      %v854 = vpop.permute.xlu0 %853
      %855 = vrot.lane.b32.xlu0 %v808, 124
      %v856 = vpop.permute.xlu0 %855
      %v873 = vmin.f32 %v628, %v826
      %v874 = vmin.f32 %v628, %v828
      %v875 = vmin.f32 %v628, %v830
      %v876 = vmin.f32 %v628, %v832
      %v877 = vmin.f32 %v628, %v834
      %v878 = vmin.f32 %v628, %v836
      %v879 = vmin.f32 %v628, %v838
      %v880 = vmin.f32 %v628, %v840
      %v881 = vmin.f32 %v628, %v842
      %v882 = vmin.f32 %v628, %v844
      %v883 = vmin.f32 %v628, %v846
      %v884 = vmin.f32 %v628, %v848
      %v885 = vmin.f32 %v628, %v850
      %v886 = vmin.f32 %v628, %v852
      %v887 = vmin.f32 %v628, %v854
      %v888 = vmin.f32 %v628, %v856
      %889 = vrot.lane.b32.xlu0 %v793, 123
      %v890 = vpop.permute.xlu0 %889
      %891 = vrot.lane.b32.xlu0 %v794, 123
      %v892 = vpop.permute.xlu0 %891
      %893 = vrot.lane.b32.xlu0 %v795, 123
      %v894 = vpop.permute.xlu0 %893
      %895 = vrot.lane.b32.xlu0 %v796, 123
      %v896 = vpop.permute.xlu0 %895
      %897 = vrot.lane.b32.xlu0 %v797, 123
      %v898 = vpop.permute.xlu0 %897
      %899 = vrot.lane.b32.xlu0 %v798, 123
      %v900 = vpop.permute.xlu0 %899
      %901 = vrot.lane.b32.xlu0 %v799, 123
      %v902 = vpop.permute.xlu0 %901
      %903 = vrot.lane.b32.xlu0 %v800, 123
      %v904 = vpop.permute.xlu0 %903
      %905 = vrot.lane.b32.xlu0 %v801, 123
      %v906 = vpop.permute.xlu0 %905
      %907 = vrot.lane.b32.xlu0 %v802, 123
      %v908 = vpop.permute.xlu0 %907
      %909 = vrot.lane.b32.xlu0 %v803, 123
      %v910 = vpop.permute.xlu0 %909
      %911 = vrot.lane.b32.xlu0 %v804, 123
      %v912 = vpop.permute.xlu0 %911
      %913 = vrot.lane.b32.xlu0 %v805, 123
      %v914 = vpop.permute.xlu0 %913
      %915 = vrot.lane.b32.xlu0 %v806, 123
      %v916 = vpop.permute.xlu0 %915
      %917 = vrot.lane.b32.xlu0 %v807, 123
      %v918 = vpop.permute.xlu0 %917
      %919 = vrot.lane.b32.xlu0 %v808, 123
      %v920 = vpop.permute.xlu0 %919
      %v937 = vmin.f32 %v712, %v890
      %v938 = vmin.f32 %v712, %v892
      %v939 = vmin.f32 %v712, %v894
      %v940 = vmin.f32 %v712, %v896
      %v941 = vmin.f32 %v712, %v898
      %v942 = vmin.f32 %v712, %v900
      %v943 = vmin.f32 %v712, %v902
      %v944 = vmin.f32 %v712, %v904
      %v945 = vmin.f32 %v712, %v906
      %v946 = vmin.f32 %v712, %v908
      %v947 = vmin.f32 %v712, %v910
      %v948 = vmin.f32 %v712, %v912
      %v949 = vmin.f32 %v712, %v914
      %v950 = vmin.f32 %v712, %v916
      %v951 = vmin.f32 %v712, %v918
      %v952 = vmin.f32 %v712, %v920
      %v953 = vsub.f32 %v873, %v693
      %v954 = vsub.f32 %v874, %v694
      %v955 = vsub.f32 %v875, %v695
      %v956 = vsub.f32 %v876, %v696
      %v957 = vsub.f32 %v877, %v697
      %v958 = vsub.f32 %v878, %v698
      %v959 = vsub.f32 %v879, %v699
      %v960 = vsub.f32 %v880, %v700
      %v961 = vsub.f32 %v881, %v701
      %v962 = vsub.f32 %v882, %v702
      %v963 = vsub.f32 %v883, %v703
      %v964 = vsub.f32 %v884, %v704
      %v965 = vsub.f32 %v885, %v705
      %v966 = vsub.f32 %v886, %v706
      %v967 = vsub.f32 %v887, %v707
      %v968 = vsub.f32 %v888, %v708
      %v969 = vadd.f32 %v953, 1.0
      %v970 = vadd.f32 %v954, 1.0
      %v971 = vadd.f32 %v955, 1.0
      %v972 = vadd.f32 %v956, 1.0
      %v973 = vadd.f32 %v957, 1.0
      %v974 = vadd.f32 %v958, 1.0
      %v975 = vadd.f32 %v959, 1.0
      %v976 = vadd.f32 %v960, 1.0
      %v977 = vadd.f32 %v961, 1.0
      %v978 = vadd.f32 %v962, 1.0
      %v979 = vadd.f32 %v963, 1.0
      %v980 = vadd.f32 %v964, 1.0
      %v981 = vadd.f32 %v965, 1.0
      %v982 = vadd.f32 %v966, 1.0
      %v983 = vadd.f32 %v967, 1.0
      %v984 = vadd.f32 %v968, 1.0
      %v985 = vsub.f32 %v937, %v761
      %v986 = vsub.f32 %v938, %v762
      %v987 = vsub.f32 %v939, %v763
      %v988 = vsub.f32 %v940, %v764
      %v989 = vsub.f32 %v941, %v765
      %v990 = vsub.f32 %v942, %v766
      %v991 = vsub.f32 %v943, %v767
      %v992 = vsub.f32 %v944, %v768
      %v993 = vsub.f32 %v945, %v769
      %v994 = vsub.f32 %v946, %v770
      %v995 = vsub.f32 %v947, %v771
      %v996 = vsub.f32 %v948, %v772
      %v997 = vsub.f32 %v949, %v773
      %v998 = vsub.f32 %v950, %v774
      %v999 = vsub.f32 %v951, %v775
      %v1000 = vsub.f32 %v952, %v776
      %v1001 = vadd.f32 %v985, 1.0
      %v1002 = vadd.f32 %v986, 1.0
      %v1003 = vadd.f32 %v987, 1.0
      %v1004 = vadd.f32 %v988, 1.0
      %v1005 = vadd.f32 %v989, 1.0
      %v1006 = vadd.f32 %v990, 1.0
      %v1007 = vadd.f32 %v991, 1.0
      %v1008 = vadd.f32 %v992, 1.0
      %v1009 = vadd.f32 %v993, 1.0
      %v1010 = vadd.f32 %v994, 1.0
      %v1011 = vadd.f32 %v995, 1.0
      %v1012 = vadd.f32 %v996, 1.0
      %v1013 = vadd.f32 %v997, 1.0
      %v1014 = vadd.f32 %v998, 1.0
      %v1015 = vadd.f32 %v999, 1.0
      %v1016 = vadd.f32 %v1000, 1.0
      %v1017 = vmul.f32 %v969, %v1001
      %v1018 = vmul.f32 %v970, %v1002
      %v1019 = vmul.f32 %v971, %v1003
      %v1020 = vmul.f32 %v972, %v1004
      %v1021 = vmul.f32 %v973, %v1005
      %v1022 = vmul.f32 %v974, %v1006
      %v1023 = vmul.f32 %v975, %v1007
      %v1024 = vmul.f32 %v976, %v1008
      %v1025 = vmul.f32 %v977, %v1009
      %v1026 = vmul.f32 %v978, %v1010
      %v1027 = vmul.f32 %v979, %v1011
      %v1028 = vmul.f32 %v980, %v1012
      %v1029 = vmul.f32 %v981, %v1013
      %v1030 = vmul.f32 %v982, %v1014
      %v1031 = vmul.f32 %v983, %v1015
      %v1032 = vmul.f32 %v984, %v1016
      %v1034 = vrot.slane %v303, 6
      %v1036 = vsub.f32 %v303, %v1034
      %v1037 = vadd.f32 %v1036, 1.0
      %v1039 = vrot.slane %v1037, 1
      %v1041 = vmul.f32 %v1037, %v1039
      %1043 = vset.pattern.permute.xlu0 0
      %1044 = vperm.xlu0 %1043, %v873
      %v1045 = vpop.permute.xlu0 %1044
      %1048 = vset.pattern.permute.xlu0 0
      %1049 = vperm.xlu0 %1048, %v874
      %v1050 = vpop.permute.xlu0 %1049
      %1053 = vset.pattern.permute.xlu0 0
      %1054 = vperm.xlu0 %1053, %v875
      %v1055 = vpop.permute.xlu0 %1054
      %1058 = vset.pattern.permute.xlu0 0
      %1059 = vperm.xlu0 %1058, %v876
      %v1060 = vpop.permute.xlu0 %1059
      %1063 = vset.pattern.permute.xlu0 0
      %1064 = vperm.xlu0 %1063, %v877
      %v1065 = vpop.permute.xlu0 %1064
      %1068 = vset.pattern.permute.xlu0 0
      %1069 = vperm.xlu0 %1068, %v878
      %v1070 = vpop.permute.xlu0 %1069
      %1073 = vset.pattern.permute.xlu0 0
      %1074 = vperm.xlu0 %1073, %v879
      %v1075 = vpop.permute.xlu0 %1074
      %1078 = vset.pattern.permute.xlu0 0
      %1079 = vperm.xlu0 %1078, %v880
      %v1080 = vpop.permute.xlu0 %1079
      %1083 = vset.pattern.permute.xlu0 0
      %1084 = vperm.xlu0 %1083, %v881
      %v1085 = vpop.permute.xlu0 %1084
      %1088 = vset.pattern.permute.xlu0 0
      %1089 = vperm.xlu0 %1088, %v882
      %v1090 = vpop.permute.xlu0 %1089
      %1093 = vset.pattern.permute.xlu0 0
      %1094 = vperm.xlu0 %1093, %v883
      %v1095 = vpop.permute.xlu0 %1094
      %1098 = vset.pattern.permute.xlu0 0
      %1099 = vperm.xlu0 %1098, %v884
      %v1100 = vpop.permute.xlu0 %1099
      %1103 = vset.pattern.permute.xlu0 0
      %1104 = vperm.xlu0 %1103, %v885
      %v1105 = vpop.permute.xlu0 %1104
      %1108 = vset.pattern.permute.xlu0 0
      %1109 = vperm.xlu0 %1108, %v886
      %v1110 = vpop.permute.xlu0 %1109
      %1113 = vset.pattern.permute.xlu0 0
      %1114 = vperm.xlu0 %1113, %v887
      %v1115 = vpop.permute.xlu0 %1114
      %1118 = vset.pattern.permute.xlu0 0
      %1119 = vperm.xlu0 %1118, %v888
      %v1120 = vpop.permute.xlu0 %1119
      %v1122 = vlaneseq
      %v1123 = vshrl.u32 %v1122, 7
      %v1124 = vsub.s32 2, %v1123
      %v1125 = vrot.slane %v303, %v1124
      %v1126 = vmin.f32 %v1045, %v1125
      %v1127 = vmin.f32 %v1050, %v1125
      %v1128 = vmin.f32 %v1055, %v1125
      %v1129 = vmin.f32 %v1060, %v1125
      %v1130 = vmin.f32 %v1065, %v1125
      %v1131 = vmin.f32 %v1070, %v1125
      %v1132 = vmin.f32 %v1075, %v1125
      %v1133 = vmin.f32 %v1080, %v1125
      %v1134 = vmin.f32 %v1085, %v1125
      %v1135 = vmin.f32 %v1090, %v1125
      %v1136 = vmin.f32 %v1095, %v1125
      %v1137 = vmin.f32 %v1100, %v1125
      %v1138 = vmin.f32 %v1105, %v1125
      %v1139 = vmin.f32 %v1110, %v1125
      %v1140 = vmin.f32 %v1115, %v1125
      %v1141 = vmin.f32 %v1120, %v1125
      %1143 = vset.pattern.permute.xlu0 0
      %1144 = vperm.xlu0 %1143, %v693
      %v1145 = vpop.permute.xlu0 %1144
      %1148 = vset.pattern.permute.xlu0 0
      %1149 = vperm.xlu0 %1148, %v694
      %v1150 = vpop.permute.xlu0 %1149
      %1153 = vset.pattern.permute.xlu0 0
      %1154 = vperm.xlu0 %1153, %v695
      %v1155 = vpop.permute.xlu0 %1154
      %1158 = vset.pattern.permute.xlu0 0
      %1159 = vperm.xlu0 %1158, %v696
      %v1160 = vpop.permute.xlu0 %1159
      %1163 = vset.pattern.permute.xlu0 0
      %1164 = vperm.xlu0 %1163, %v697
      %v1165 = vpop.permute.xlu0 %1164
      %1168 = vset.pattern.permute.xlu0 0
      %1169 = vperm.xlu0 %1168, %v698
      %v1170 = vpop.permute.xlu0 %1169
      %1173 = vset.pattern.permute.xlu0 0
      %1174 = vperm.xlu0 %1173, %v699
      %v1175 = vpop.permute.xlu0 %1174
      %1178 = vset.pattern.permute.xlu0 0
      %1179 = vperm.xlu0 %1178, %v700
      %v1180 = vpop.permute.xlu0 %1179
      %1183 = vset.pattern.permute.xlu0 0
      %1184 = vperm.xlu0 %1183, %v701
      %v1185 = vpop.permute.xlu0 %1184
      %1188 = vset.pattern.permute.xlu0 0
      %1189 = vperm.xlu0 %1188, %v702
      %v1190 = vpop.permute.xlu0 %1189
      %1193 = vset.pattern.permute.xlu0 0
      %1194 = vperm.xlu0 %1193, %v703
      %v1195 = vpop.permute.xlu0 %1194
      %1198 = vset.pattern.permute.xlu0 0
      %1199 = vperm.xlu0 %1198, %v704
      %v1200 = vpop.permute.xlu0 %1199
      %1203 = vset.pattern.permute.xlu0 0
      %1204 = vperm.xlu0 %1203, %v705
      %v1205 = vpop.permute.xlu0 %1204
      %1208 = vset.pattern.permute.xlu0 0
      %1209 = vperm.xlu0 %1208, %v706
      %v1210 = vpop.permute.xlu0 %1209
      %1213 = vset.pattern.permute.xlu0 0
      %1214 = vperm.xlu0 %1213, %v707
      %v1215 = vpop.permute.xlu0 %1214
      %1218 = vset.pattern.permute.xlu0 0
      %1219 = vperm.xlu0 %1218, %v708
      %v1220 = vpop.permute.xlu0 %1219
      %v1222 = vlaneseq
      %v1223 = vshrl.u32 %v1222, 7
      %v1224 = vsub.s32 0, %v1223
      %v1225 = vrot.slane %v303, %v1224
      %v1226 = vmax.f32 %v1145, %v1225
      %v1227 = vmax.f32 %v1150, %v1225
      %v1228 = vmax.f32 %v1155, %v1225
      %v1229 = vmax.f32 %v1160, %v1225
      %v1230 = vmax.f32 %v1165, %v1225
      %v1231 = vmax.f32 %v1170, %v1225
      %v1232 = vmax.f32 %v1175, %v1225
      %v1233 = vmax.f32 %v1180, %v1225
      %v1234 = vmax.f32 %v1185, %v1225
      %v1235 = vmax.f32 %v1190, %v1225
      %v1236 = vmax.f32 %v1195, %v1225
      %v1237 = vmax.f32 %v1200, %v1225
      %v1238 = vmax.f32 %v1205, %v1225
      %v1239 = vmax.f32 %v1210, %v1225
      %v1240 = vmax.f32 %v1215, %v1225
      %v1241 = vmax.f32 %v1220, %v1225
      %v1242 = vsub.f32 %v1126, %v1226
      %v1243 = vsub.f32 %v1127, %v1227
      %v1244 = vsub.f32 %v1128, %v1228
      %v1245 = vsub.f32 %v1129, %v1229
      %v1246 = vsub.f32 %v1130, %v1230
      %v1247 = vsub.f32 %v1131, %v1231
      %v1248 = vsub.f32 %v1132, %v1232
      %v1249 = vsub.f32 %v1133, %v1233
      %v1250 = vsub.f32 %v1134, %v1234
      %v1251 = vsub.f32 %v1135, %v1235
      %v1252 = vsub.f32 %v1136, %v1236
      %v1253 = vsub.f32 %v1137, %v1237
      %v1254 = vsub.f32 %v1138, %v1238
      %v1255 = vsub.f32 %v1139, %v1239
      %v1256 = vsub.f32 %v1140, %v1240
      %v1257 = vsub.f32 %v1141, %v1241
      %v1258 = vadd.f32 %v1242, 1.0
      %v1259 = vadd.f32 %v1243, 1.0
      %v1260 = vadd.f32 %v1244, 1.0
      %v1261 = vadd.f32 %v1245, 1.0
      %v1262 = vadd.f32 %v1246, 1.0
      %v1263 = vadd.f32 %v1247, 1.0
      %v1264 = vadd.f32 %v1248, 1.0
      %v1265 = vadd.f32 %v1249, 1.0
      %v1266 = vadd.f32 %v1250, 1.0
      %v1267 = vadd.f32 %v1251, 1.0
      %v1268 = vadd.f32 %v1252, 1.0
      %v1269 = vadd.f32 %v1253, 1.0
      %v1270 = vadd.f32 %v1254, 1.0
      %v1271 = vadd.f32 %v1255, 1.0
      %v1272 = vadd.f32 %v1256, 1.0
      %v1273 = vadd.f32 %v1257, 1.0
      %v1274 = vmax.f32 %v1258, 0.0
      %v1275 = vmax.f32 %v1259, 0.0
      %v1276 = vmax.f32 %v1260, 0.0
      %v1277 = vmax.f32 %v1261, 0.0
      %v1278 = vmax.f32 %v1262, 0.0
      %v1279 = vmax.f32 %v1263, 0.0
      %v1280 = vmax.f32 %v1264, 0.0
      %v1281 = vmax.f32 %v1265, 0.0
      %v1282 = vmax.f32 %v1266, 0.0
      %v1283 = vmax.f32 %v1267, 0.0
      %v1284 = vmax.f32 %v1268, 0.0
      %v1285 = vmax.f32 %v1269, 0.0
      %v1286 = vmax.f32 %v1270, 0.0
      %v1287 = vmax.f32 %v1271, 0.0
      %v1288 = vmax.f32 %v1272, 0.0
      %v1289 = vmax.f32 %v1273, 0.0
      %1291 = vset.pattern.permute.xlu0 0
      %1292 = vperm.xlu0 %1291, %v937
      %v1293 = vpop.permute.xlu0 %1292
      %1296 = vset.pattern.permute.xlu0 0
      %1297 = vperm.xlu0 %1296, %v938
      %v1298 = vpop.permute.xlu0 %1297
      %1301 = vset.pattern.permute.xlu0 0
      %1302 = vperm.xlu0 %1301, %v939
      %v1303 = vpop.permute.xlu0 %1302
      %1306 = vset.pattern.permute.xlu0 0
      %1307 = vperm.xlu0 %1306, %v940
      %v1308 = vpop.permute.xlu0 %1307
      %1311 = vset.pattern.permute.xlu0 0
      %1312 = vperm.xlu0 %1311, %v941
      %v1313 = vpop.permute.xlu0 %1312
      %1316 = vset.pattern.permute.xlu0 0
      %1317 = vperm.xlu0 %1316, %v942
      %v1318 = vpop.permute.xlu0 %1317
      %1321 = vset.pattern.permute.xlu0 0
      %1322 = vperm.xlu0 %1321, %v943
      %v1323 = vpop.permute.xlu0 %1322
      %1326 = vset.pattern.permute.xlu0 0
      %1327 = vperm.xlu0 %1326, %v944
      %v1328 = vpop.permute.xlu0 %1327
      %1331 = vset.pattern.permute.xlu0 0
      %1332 = vperm.xlu0 %1331, %v945
      %v1333 = vpop.permute.xlu0 %1332
      %1336 = vset.pattern.permute.xlu0 0
      %1337 = vperm.xlu0 %1336, %v946
      %v1338 = vpop.permute.xlu0 %1337
      %1341 = vset.pattern.permute.xlu0 0
      %1342 = vperm.xlu0 %1341, %v947
      %v1343 = vpop.permute.xlu0 %1342
      %1346 = vset.pattern.permute.xlu0 0
      %1347 = vperm.xlu0 %1346, %v948
      %v1348 = vpop.permute.xlu0 %1347
      %1351 = vset.pattern.permute.xlu0 0
      %1352 = vperm.xlu0 %1351, %v949
      %v1353 = vpop.permute.xlu0 %1352
      %1356 = vset.pattern.permute.xlu0 0
      %1357 = vperm.xlu0 %1356, %v950
      %v1358 = vpop.permute.xlu0 %1357
      %1361 = vset.pattern.permute.xlu0 0
      %1362 = vperm.xlu0 %1361, %v951
      %v1363 = vpop.permute.xlu0 %1362
      %1366 = vset.pattern.permute.xlu0 0
      %1367 = vperm.xlu0 %1366, %v952
      %v1368 = vpop.permute.xlu0 %1367
      %v1370 = vlaneseq
      %v1371 = vshrl.u32 %v1370, 7
      %v1372 = vsub.s32 3, %v1371
      %v1373 = vrot.slane %v303, %v1372
      %v1374 = vmin.f32 %v1293, %v1373
      %v1375 = vmin.f32 %v1298, %v1373
      %v1376 = vmin.f32 %v1303, %v1373
      %v1377 = vmin.f32 %v1308, %v1373
      %v1378 = vmin.f32 %v1313, %v1373
      %v1379 = vmin.f32 %v1318, %v1373
      %v1380 = vmin.f32 %v1323, %v1373
      %v1381 = vmin.f32 %v1328, %v1373
      %v1382 = vmin.f32 %v1333, %v1373
      %v1383 = vmin.f32 %v1338, %v1373
      %v1384 = vmin.f32 %v1343, %v1373
      %v1385 = vmin.f32 %v1348, %v1373
      %v1386 = vmin.f32 %v1353, %v1373
      %v1387 = vmin.f32 %v1358, %v1373
      %v1388 = vmin.f32 %v1363, %v1373
      %v1389 = vmin.f32 %v1368, %v1373
      %1391 = vset.pattern.permute.xlu0 0
      %1392 = vperm.xlu0 %1391, %v761
      %v1393 = vpop.permute.xlu0 %1392
      %1396 = vset.pattern.permute.xlu0 0
      %1397 = vperm.xlu0 %1396, %v762
      %v1398 = vpop.permute.xlu0 %1397
      %1401 = vset.pattern.permute.xlu0 0
      %1402 = vperm.xlu0 %1401, %v763
      %v1403 = vpop.permute.xlu0 %1402
      %1406 = vset.pattern.permute.xlu0 0
      %1407 = vperm.xlu0 %1406, %v764
      %v1408 = vpop.permute.xlu0 %1407
      %1411 = vset.pattern.permute.xlu0 0
      %1412 = vperm.xlu0 %1411, %v765
      %v1413 = vpop.permute.xlu0 %1412
      %1416 = vset.pattern.permute.xlu0 0
      %1417 = vperm.xlu0 %1416, %v766
      %v1418 = vpop.permute.xlu0 %1417
      %1421 = vset.pattern.permute.xlu0 0
      %1422 = vperm.xlu0 %1421, %v767
      %v1423 = vpop.permute.xlu0 %1422
      %1426 = vset.pattern.permute.xlu0 0
      %1427 = vperm.xlu0 %1426, %v768
      %v1428 = vpop.permute.xlu0 %1427
      %1431 = vset.pattern.permute.xlu0 0
      %1432 = vperm.xlu0 %1431, %v769
      %v1433 = vpop.permute.xlu0 %1432
      %1436 = vset.pattern.permute.xlu0 0
      %1437 = vperm.xlu0 %1436, %v770
      %v1438 = vpop.permute.xlu0 %1437
      %1441 = vset.pattern.permute.xlu0 0
      %1442 = vperm.xlu0 %1441, %v771
      %v1443 = vpop.permute.xlu0 %1442
      %1446 = vset.pattern.permute.xlu0 0
      %1447 = vperm.xlu0 %1446, %v772
      %v1448 = vpop.permute.xlu0 %1447
      %1451 = vset.pattern.permute.xlu0 0
      %1452 = vperm.xlu0 %1451, %v773
      %v1453 = vpop.permute.xlu0 %1452
      %1456 = vset.pattern.permute.xlu0 0
      %1457 = vperm.xlu0 %1456, %v774
      %v1458 = vpop.permute.xlu0 %1457
      %1461 = vset.pattern.permute.xlu0 0
      %1462 = vperm.xlu0 %1461, %v775
      %v1463 = vpop.permute.xlu0 %1462
      %1466 = vset.pattern.permute.xlu0 0
      %1467 = vperm.xlu0 %1466, %v776
      %v1468 = vpop.permute.xlu0 %1467
      %v1470 = vlaneseq
      %v1471 = vshrl.u32 %v1470, 7
      %v1472 = vsub.s32 1, %v1471
      %v1473 = vrot.slane %v303, %v1472
      %v1474 = vmax.f32 %v1393, %v1473
      %v1475 = vmax.f32 %v1398, %v1473
      %v1476 = vmax.f32 %v1403, %v1473
      %v1477 = vmax.f32 %v1408, %v1473
      %v1478 = vmax.f32 %v1413, %v1473
      %v1479 = vmax.f32 %v1418, %v1473
      %v1480 = vmax.f32 %v1423, %v1473
      %v1481 = vmax.f32 %v1428, %v1473
      %v1482 = vmax.f32 %v1433, %v1473
      %v1483 = vmax.f32 %v1438, %v1473
      %v1484 = vmax.f32 %v1443, %v1473
      %v1485 = vmax.f32 %v1448, %v1473
      %v1486 = vmax.f32 %v1453, %v1473
      %v1487 = vmax.f32 %v1458, %v1473
      %v1488 = vmax.f32 %v1463, %v1473
      %v1489 = vmax.f32 %v1468, %v1473
      %v1490 = vsub.f32 %v1374, %v1474
      %v1491 = vsub.f32 %v1375, %v1475
      %v1492 = vsub.f32 %v1376, %v1476
      %v1493 = vsub.f32 %v1377, %v1477
      %v1494 = vsub.f32 %v1378, %v1478
      %v1495 = vsub.f32 %v1379, %v1479
      %v1496 = vsub.f32 %v1380, %v1480
      %v1497 = vsub.f32 %v1381, %v1481
      %v1498 = vsub.f32 %v1382, %v1482
      %v1499 = vsub.f32 %v1383, %v1483
      %v1500 = vsub.f32 %v1384, %v1484
      %v1501 = vsub.f32 %v1385, %v1485
      %v1502 = vsub.f32 %v1386, %v1486
      %v1503 = vsub.f32 %v1387, %v1487
      %v1504 = vsub.f32 %v1388, %v1488
      %v1505 = vsub.f32 %v1389, %v1489
      %v1506 = vadd.f32 %v1490, 1.0
      %v1507 = vadd.f32 %v1491, 1.0
      %v1508 = vadd.f32 %v1492, 1.0
      %v1509 = vadd.f32 %v1493, 1.0
      %v1510 = vadd.f32 %v1494, 1.0
      %v1511 = vadd.f32 %v1495, 1.0
      %v1512 = vadd.f32 %v1496, 1.0
      %v1513 = vadd.f32 %v1497, 1.0
      %v1514 = vadd.f32 %v1498, 1.0
      %v1515 = vadd.f32 %v1499, 1.0
      %v1516 = vadd.f32 %v1500, 1.0
      %v1517 = vadd.f32 %v1501, 1.0
      %v1518 = vadd.f32 %v1502, 1.0
      %v1519 = vadd.f32 %v1503, 1.0
      %v1520 = vadd.f32 %v1504, 1.0
      %v1521 = vadd.f32 %v1505, 1.0
      %v1522 = vmax.f32 %v1506, 0.0
      %v1523 = vmax.f32 %v1507, 0.0
      %v1524 = vmax.f32 %v1508, 0.0
      %v1525 = vmax.f32 %v1509, 0.0
      %v1526 = vmax.f32 %v1510, 0.0
      %v1527 = vmax.f32 %v1511, 0.0
      %v1528 = vmax.f32 %v1512, 0.0
      %v1529 = vmax.f32 %v1513, 0.0
      %v1530 = vmax.f32 %v1514, 0.0
      %v1531 = vmax.f32 %v1515, 0.0
      %v1532 = vmax.f32 %v1516, 0.0
      %v1533 = vmax.f32 %v1517, 0.0
      %v1534 = vmax.f32 %v1518, 0.0
      %v1535 = vmax.f32 %v1519, 0.0
      %v1536 = vmax.f32 %v1520, 0.0
      %v1537 = vmax.f32 %v1521, 0.0
      %v1538 = vmul.f32 %v1274, %v1522
      %v1539 = vmul.f32 %v1275, %v1523
      %v1540 = vmul.f32 %v1276, %v1524
      %v1541 = vmul.f32 %v1277, %v1525
      %v1542 = vmul.f32 %v1278, %v1526
      %v1543 = vmul.f32 %v1279, %v1527
      %v1544 = vmul.f32 %v1280, %v1528
      %v1545 = vmul.f32 %v1281, %v1529
      %v1546 = vmul.f32 %v1282, %v1530
      %v1547 = vmul.f32 %v1283, %v1531
      %v1548 = vmul.f32 %v1284, %v1532
      %v1549 = vmul.f32 %v1285, %v1533
      %v1550 = vmul.f32 %v1286, %v1534
      %v1551 = vmul.f32 %v1287, %v1535
      %v1552 = vmul.f32 %v1288, %v1536
      %v1553 = vmul.f32 %v1289, %v1537
      %1555 = vset.pattern.permute.xlu0 0
      %1556 = vperm.xlu0 %1555, %v1017
      %v1557 = vpop.permute.xlu0 %1556
      %1560 = vset.pattern.permute.xlu0 0
      %1561 = vperm.xlu0 %1560, %v1018
      %v1562 = vpop.permute.xlu0 %1561
      %1565 = vset.pattern.permute.xlu0 0
      %1566 = vperm.xlu0 %1565, %v1019
      %v1567 = vpop.permute.xlu0 %1566
      %1570 = vset.pattern.permute.xlu0 0
      %1571 = vperm.xlu0 %1570, %v1020
      %v1572 = vpop.permute.xlu0 %1571
      %1575 = vset.pattern.permute.xlu0 0
      %1576 = vperm.xlu0 %1575, %v1021
      %v1577 = vpop.permute.xlu0 %1576
      %1580 = vset.pattern.permute.xlu0 0
      %1581 = vperm.xlu0 %1580, %v1022
      %v1582 = vpop.permute.xlu0 %1581
      %1585 = vset.pattern.permute.xlu0 0
      %1586 = vperm.xlu0 %1585, %v1023
      %v1587 = vpop.permute.xlu0 %1586
      %1590 = vset.pattern.permute.xlu0 0
      %1591 = vperm.xlu0 %1590, %v1024
      %v1592 = vpop.permute.xlu0 %1591
      %1595 = vset.pattern.permute.xlu0 0
      %1596 = vperm.xlu0 %1595, %v1025
      %v1597 = vpop.permute.xlu0 %1596
      %1600 = vset.pattern.permute.xlu0 0
      %1601 = vperm.xlu0 %1600, %v1026
      %v1602 = vpop.permute.xlu0 %1601
      %1605 = vset.pattern.permute.xlu0 0
      %1606 = vperm.xlu0 %1605, %v1027
      %v1607 = vpop.permute.xlu0 %1606
      %1610 = vset.pattern.permute.xlu0 0
      %1611 = vperm.xlu0 %1610, %v1028
      %v1612 = vpop.permute.xlu0 %1611
      %1615 = vset.pattern.permute.xlu0 0
      %1616 = vperm.xlu0 %1615, %v1029
      %v1617 = vpop.permute.xlu0 %1616
      %1620 = vset.pattern.permute.xlu0 0
      %1621 = vperm.xlu0 %1620, %v1030
      %v1622 = vpop.permute.xlu0 %1621
      %1625 = vset.pattern.permute.xlu0 0
      %1626 = vperm.xlu0 %1625, %v1031
      %v1627 = vpop.permute.xlu0 %1626
      %1630 = vset.pattern.permute.xlu0 0
      %1631 = vperm.xlu0 %1630, %v1032
      %v1632 = vpop.permute.xlu0 %1631
      %v1634 = vlaneseq
      %v1635 = vshrl.u32 %v1634, 7
      %v1636 = vsub.s32 2, %v1635
      %v1637 = vrot.slane %v1041, %v1636
      %v1638 = vadd.f32 %v1557, %v1637
      %v1639 = vadd.f32 %v1562, %v1637
      %v1640 = vadd.f32 %v1567, %v1637
      %v1641 = vadd.f32 %v1572, %v1637
      %v1642 = vadd.f32 %v1577, %v1637
      %v1643 = vadd.f32 %v1582, %v1637
      %v1644 = vadd.f32 %v1587, %v1637
      %v1645 = vadd.f32 %v1592, %v1637
      %v1646 = vadd.f32 %v1597, %v1637
      %v1647 = vadd.f32 %v1602, %v1637
      %v1648 = vadd.f32 %v1607, %v1637
      %v1649 = vadd.f32 %v1612, %v1637
      %v1650 = vadd.f32 %v1617, %v1637
      %v1651 = vadd.f32 %v1622, %v1637
      %v1652 = vadd.f32 %v1627, %v1637
      %v1653 = vadd.f32 %v1632, %v1637
      %v1654 = vsub.f32 %v1638, %v1538
      %v1655 = vsub.f32 %v1639, %v1539
      %v1656 = vsub.f32 %v1640, %v1540
      %v1657 = vsub.f32 %v1641, %v1541
      %v1658 = vsub.f32 %v1642, %v1542
      %v1659 = vsub.f32 %v1643, %v1543
      %v1660 = vsub.f32 %v1644, %v1544
      %v1661 = vsub.f32 %v1645, %v1545
      %v1662 = vsub.f32 %v1646, %v1546
      %v1663 = vsub.f32 %v1647, %v1547
      %v1664 = vsub.f32 %v1648, %v1548
      %v1665 = vsub.f32 %v1649, %v1549
      %v1666 = vsub.f32 %v1650, %v1550
      %v1667 = vsub.f32 %v1651, %v1551
      %v1668 = vsub.f32 %v1652, %v1552
      %v1669 = vsub.f32 %v1653, %v1553
      %v1670 = vmul.f32 %v1654, 0.7
      %v1671 = vmul.f32 %v1655, 0.7
      %v1672 = vmul.f32 %v1656, 0.7
      %v1673 = vmul.f32 %v1657, 0.7
      %v1674 = vmul.f32 %v1658, 0.7
      %v1675 = vmul.f32 %v1659, 0.7
      %v1676 = vmul.f32 %v1660, 0.7
      %v1677 = vmul.f32 %v1661, 0.7
      %v1678 = vmul.f32 %v1662, 0.7
      %v1679 = vmul.f32 %v1663, 0.7
      %v1680 = vmul.f32 %v1664, 0.7
      %v1681 = vmul.f32 %v1665, 0.7
      %v1682 = vmul.f32 %v1666, 0.7
      %v1683 = vmul.f32 %v1667, 0.7
      %v1684 = vmul.f32 %v1668, 0.7
      %v1685 = vmul.f32 %v1669, 0.7
      %vm1686 = vcmp.gt.f32.partialorder %v1538, %v1670
      %vm1687 = vcmp.gt.f32.partialorder %v1539, %v1671
      %vm1688 = vcmp.gt.f32.partialorder %v1540, %v1672
      %vm1689 = vcmp.gt.f32.partialorder %v1541, %v1673
      %vm1690 = vcmp.gt.f32.partialorder %v1542, %v1674
      %vm1691 = vcmp.gt.f32.partialorder %v1543, %v1675
      %vm1692 = vcmp.gt.f32.partialorder %v1544, %v1676
      %vm1693 = vcmp.gt.f32.partialorder %v1545, %v1677
      %vm1694 = vcmp.gt.f32.partialorder %v1546, %v1678
      %vm1695 = vcmp.gt.f32.partialorder %v1547, %v1679
      %vm1696 = vcmp.gt.f32.partialorder %v1548, %v1680
      %vm1697 = vcmp.gt.f32.partialorder %v1549, %v1681
      %vm1698 = vcmp.gt.f32.partialorder %v1550, %v1682
      %vm1699 = vcmp.gt.f32.partialorder %v1551, %v1683
      %vm1700 = vcmp.gt.f32.partialorder %v1552, %v1684
      %vm1701 = vcmp.gt.f32.partialorder %v1553, %v1685
      %v1702 = vlaneseq
      %v1703 = vshrl.u32 %v1702, 7
      %v1704 = vadd.s32 %v1703, 8
      %v1705 = vadd.s32 %v1703, 16
      %v1706 = vadd.s32 %v1703, 24
      %v1707 = vadd.s32 %v1703, 32
      %v1708 = vadd.s32 %v1703, 40
      %v1709 = vadd.s32 %v1703, 48
      %v1710 = vadd.s32 %v1703, 56
      %v1711 = vadd.s32 %v1703, 64
      %v1712 = vadd.s32 %v1703, 72
      %v1713 = vadd.s32 %v1703, 80
      %v1714 = vadd.s32 %v1703, 88
      %v1715 = vadd.s32 %v1703, 96
      %v1716 = vadd.s32 %v1703, 104
      %v1717 = vadd.s32 %v1703, 112
      %v1718 = vadd.s32 %v1703, 120
      %v1719 = vlaneseq
      %v1720 = vand.u32 %v1719, 127
      %vm1721 = vcmp.gt.s32.totalorder %v1720, %v1703
      %vm1722 = vcmp.gt.s32.totalorder %v1720, %v1704
      %vm1723 = vcmp.gt.s32.totalorder %v1720, %v1705
      %vm1724 = vcmp.gt.s32.totalorder %v1720, %v1706
      %vm1725 = vcmp.gt.s32.totalorder %v1720, %v1707
      %vm1726 = vcmp.gt.s32.totalorder %v1720, %v1708
      %vm1727 = vcmp.gt.s32.totalorder %v1720, %v1709
      %vm1728 = vcmp.gt.s32.totalorder %v1720, %v1710
      %vm1729 = vcmp.gt.s32.totalorder %v1720, %v1711
      %vm1730 = vcmp.gt.s32.totalorder %v1720, %v1712
      %vm1731 = vcmp.gt.s32.totalorder %v1720, %v1713
      %vm1732 = vcmp.gt.s32.totalorder %v1720, %v1714
      %vm1733 = vcmp.gt.s32.totalorder %v1720, %v1715
      %vm1734 = vcmp.gt.s32.totalorder %v1720, %v1716
      %vm1735 = vcmp.gt.s32.totalorder %v1720, %v1717
      %vm1736 = vcmp.gt.s32.totalorder %v1720, %v1718
      %vm1737 = vmand %vm1686, %vm1721
      %vm1738 = vmand %vm1687, %vm1722
      %vm1739 = vmand %vm1688, %vm1723
      %vm1740 = vmand %vm1689, %vm1724
      %vm1741 = vmand %vm1690, %vm1725
      %vm1742 = vmand %vm1691, %vm1726
      %vm1743 = vmand %vm1692, %vm1727
      %vm1744 = vmand %vm1693, %vm1728
      %vm1745 = vmand %vm1694, %vm1729
      %vm1746 = vmand %vm1695, %vm1730
      %vm1747 = vmand %vm1696, %vm1731
      %vm1748 = vmand %vm1697, %vm1732
      %vm1749 = vmand %vm1698, %vm1733
      %vm1750 = vmand %vm1699, %vm1734
      %vm1751 = vmand %vm1700, %vm1735
      %vm1752 = vmand %vm1701, %vm1736
      %v1753 = vsel %vm1737, 1.0, 0.0
      %v1754 = vsel %vm1738, 1.0, 0.0
      %v1755 = vsel %vm1739, 1.0, 0.0
      %v1756 = vsel %vm1740, 1.0, 0.0
      %v1757 = vsel %vm1741, 1.0, 0.0
      %v1758 = vsel %vm1742, 1.0, 0.0
      %v1759 = vsel %vm1743, 1.0, 0.0
      %v1760 = vsel %vm1744, 1.0, 0.0
      %v1761 = vsel %vm1745, 1.0, 0.0
      %v1762 = vsel %vm1746, 1.0, 0.0
      %v1763 = vsel %vm1747, 1.0, 0.0
      %v1764 = vsel %vm1748, 1.0, 0.0
      %v1765 = vsel %vm1749, 1.0, 0.0
      %v1766 = vsel %vm1750, 1.0, 0.0
      %v1767 = vsel %vm1751, 1.0, 0.0
      %v1768 = vsel %vm1752, 1.0, 0.0
      %1769 = vst [vmem:[%s270] sm:$0xff] %v1753
      %1770 = vst [vmem:[%s270 + $0x8] sm:$0xff] %v1754
      %1771 = vst [vmem:[%s270 + $0x10] sm:$0xff] %v1755
      %1772 = vst [vmem:[%s270 + $0x18] sm:$0xff] %v1756
      %1773 = vst [vmem:[%s270 + $0x20] sm:$0xff] %v1757
      %1774 = vst [vmem:[%s270 + $0x28] sm:$0xff] %v1758
      %1775 = vst [vmem:[%s270 + $0x30] sm:$0xff] %v1759
      %1776 = vst [vmem:[%s270 + $0x38] sm:$0xff] %v1760
      %1777 = vst [vmem:[%s270 + $0x40] sm:$0xff] %v1761
      %1778 = vst [vmem:[%s270 + $0x48] sm:$0xff] %v1762
      %1779 = vst [vmem:[%s270 + $0x50] sm:$0xff] %v1763
      %1780 = vst [vmem:[%s270 + $0x58] sm:$0xff] %v1764
      %1781 = vst [vmem:[%s270 + $0x60] sm:$0xff] %v1765
      %1782 = vst [vmem:[%s270 + $0x68] sm:$0xff] %v1766
      %1783 = vst [vmem:[%s270 + $0x70] sm:$0xff] %v1767
      %1784 = vst [vmem:[%s270 + $0x78] sm:$0xff] %v1768
      %p1785 = scmp.lt.s32.totalorder %s20, 1
      %s1786 = scalar_select %p1785, %s20, 1
      %p1787 = scmp.lt.s32.totalorder %s21, 0
      %s1788 = scalar_select %p1787, %s21, 0
      %s1789 = sadd.s32 %s1788, %s1786
      %s1790 = smul.addr %s1789, 4
      %s1791 = scalar_lea.vmem %s3, %s1790
      %p1792 = scmp.lt.s32.totalorder %s20, 1
      %s1793 = scalar_select %p1792, %s20, 1
      %p1794 = scmp.lt.s32.totalorder %s21, 0
      %s1795 = scalar_select %p1794, %s21, 0
      %s1796 = smul.addr %s1793, 16
      %s1797 = sadd.s32 %s1795, %s1796
      %s1798 = smul.addr %s1797, 8
      %s1799 = scalar_lea.vmem %s4, %s1798
      // Predicated region
      $region33: #{_forward_impl.1} parent=31 // pred_check
        %p1800 = pneg %p126
      $region34: #{_forward_impl.1} parent=31 // pred_check_branch
        %1802 = sbr.rel (%p1800) target = $region36
      $region35: #{_forward_impl.1} parent=31 // pred_region
        _
      $region36: #{_forward_impl.1} parent=31 // pred_fallthru
        _
      // Predicated region
      $region37: #{_forward_impl.1} parent=31 // pred_check
        %p1803 = pneg %p154
      $region38: #{_forward_impl.1} parent=31 // pred_check_branch
        %1805 = sbr.rel (%p1803) target = $region40
      $region39: #{_forward_impl.1} parent=31 // pred_region
        _
      $region40: #{_forward_impl.1} parent=31 // pred_fallthru
        _
    $region32: #{_forward_impl.1} parent=5 // pred_fallthru
      _
    %p1806 = scmp.le.s32.totalorder 2, %s11
    // Predicated region
    $region41: #{_forward_impl.1} parent=5 // pred_check
      %p1807 = pneg %p1806
    $region42: #{_forward_impl.1} parent=5 // pred_check_branch
      %1809 = sbr.rel (%p1807) target = $region44
    $region43: #{_forward_impl.1} parent=5 // pred_region
      %s1810 = ssub.s32 %s11, 2
      // Predicated region
      $region45: #{_forward_impl.1} parent=43 // pred_check
        %p1811 = pneg %p132
      $region46: #{_forward_impl.1} parent=43 // pred_check_branch
        %1813 = sbr.rel (%p1811) target = $region48
      $region47: #{_forward_impl.1} parent=43 // pred_region
        %p1814 = scmp.lt.s32.totalorder %s22, 1
        %s1815 = scalar_select %p1814, %s22, 1
        %p1816 = scmp.lt.s32.totalorder %s23, 0
        %s1817 = scalar_select %p1816, %s23, 0
        %s1818 = sadd.s32 %s1817, %s1815
        %s1819 = smul.addr %s1818, 4
        %s1820 = scalar_lea.vmem %s3, %s1819
      $region48: #{_forward_impl.1} parent=43 // pred_fallthru
        _
      // Predicated region
      $region49: #{_forward_impl.1} parent=43 // pred_check
        %p1821 = pneg %p160
      $region50: #{_forward_impl.1} parent=43 // pred_check_branch
        %1823 = sbr.rel (%p1821) target = $region52
      $region51: #{_forward_impl.1} parent=43 // pred_region
        %p1824 = scmp.lt.s32.totalorder %s22, 1
        %s1825 = scalar_select %p1824, %s22, 1
        %p1826 = scmp.lt.s32.totalorder %s23, 0
        %s1827 = scalar_select %p1826, %s23, 0
        %s1828 = smul.addr %s1825, 16
        %s1829 = sadd.s32 %s1827, %s1828
        %s1830 = smul.addr %s1829, 8
        %s1831 = scalar_lea.vmem %s4, %s1830
      $region52: #{_forward_impl.1} parent=43 // pred_fallthru
        _
    $region44: #{_forward_impl.1} parent=5 // pred_fallthru
      _
  $region6: #{_forward_impl.1} parent=0 // loop_footer
    %s15 = sadd.s32 1, %s11
  $region7: #{_forward_impl.1} parent=0 // loop_footer_branch
    %10 = sbr.rel target = $region3
  $region8: #{_forward_impl.1} parent=0 // loop_exit
    _

</llo_original>
